<compile_context>
chip_gen: v7x
topology: tpu7x:2x2x1
jax: 0.10.0
libtpu: 0.0.40
codegen_flags: <defaults>
</compile_context>

<pallas_src>
import functools

import jax
import jax.numpy as jnp
from jax.experimental import pallas as pl
from jax.experimental.pallas import tpu as pltpu


# ----------------------------- configuration --------------------------------
ENCODER_DIM = 32            # model_config.encoder_dim
FILTER_SIZE = 32            # model_config.variance_predictor_filter_size
KERNEL_SIZE = 3             # model_config.variance_predictor_kernel_size
ENERGY_DIM = 8              # model_config.energy_dim
ENERGY_RANGE = (-1.0, 1.0)  # model_config.energy_range
LN_EPS = 1e-5

BATCH = 2
SEQ = 8


# ------------------------------- kernel -------------------------------------
def _energy_regulator_kernel(
    scalars_ref,   # (2,)   f32 SMEM: [gamma, final-linear bias]
    x_ref,         # (BT,D) f32 VMEM input activations (batch flattened)
    consts_ref,    # (R,W)  f32 VMEM packed constants (single DMA):
                   #   rows [0, K*D)          conv1 weight, tap-major (K,D,F)->(K*D,F)
                   #   rows [K*D, K*D+K*F)    conv2 weight, tap-major
                   #   next 8 rows            b1, g1, be1, b2, g2, be2, wl, pad
                   #   last E rows            energy embedding table (E, D)
    out_ref,       # (BT,D)
    *,
    T, K, pad, D, F, E, rmin, rmax,
):
    gamma = scalars_ref[0]
    bl = scalars_ref[1]

    x = x_ref[...]                                   # (BT, D) f32
    BT = x.shape[0]

    # Static row offsets into the packed constant slab (all 8-row aligned here).
    o_w1 = 0
    o_w2 = K * D
    o_vec = o_w2 + K * F
    o_emb = o_vec + 8

    w1_all = consts_ref[o_w1:o_w1 + K * D, :]        # (K*D, W)
    w2_all = consts_ref[o_w2:o_w2 + K * F, :]        # (K*F, W)
    vecs = consts_ref[o_vec:o_vec + 8, :]            # (8,   W)
    emb = consts_ref[o_emb:o_emb + E, :D]            # (E,   D)

    b1, g1, be1 = vecs[0:1, :F], vecs[1:2, :F], vecs[2:3, :F]
    b2, g2, be2 = vecs[3:4, :F], vecs[4:5, :F], vecs[5:6, :F]
    wl = vecs[6:7, :F]                               # (1, F)

    # Boundary-masked shift matrices: row r of (S_off @ h) is h[r + off] when
    # r+off lies in the same length-T segment (batch), else all-zero — which is
    # exactly the conv's same-padding and stops taps crossing batch boundaries.
    # Built once from iotas, shared by both conv blocks, no relayout copies.
    def shift_mat(off):
        ri = jax.lax.broadcasted_iota(jnp.int32, (BT, BT), 0)
        ci = jax.lax.broadcasted_iota(jnp.int32, (BT, BT), 1)
        rmod = ri % T
        ok = (ci == ri + off) & (rmod + off >= 0) & (rmod + off < T)
        return ok.astype(jnp.float32)

    offs = [k - pad for k in range(K)]
    shifts = {off: shift_mat(off) for off in offs if off != 0}

    def conv_relu_ln(h, w_all, cin, b, g, beta):
        # K accumulated matmuls against the K static per-tap weight slices;
        # back-to-back adds into one f32 accumulator (in-place MRB on v7x).
        acc = None
        for k in range(K):
            off = k - pad
            hk = h if off == 0 else jnp.dot(
                shifts[off], h, preferred_element_type=jnp.float32)
            wk = w_all[k * cin:(k + 1) * cin, :F]              # (cin, F)
            p = jnp.dot(hk, wk, preferred_element_type=jnp.float32)
            acc = p if acc is None else acc + p
        hh = jnp.maximum(acc + b, 0.0)                         # conv bias + ReLU
        mu = jnp.mean(hh, axis=-1, keepdims=True)
        var = jnp.mean((hh - mu) * (hh - mu), axis=-1, keepdims=True)
        return (hh - mu) * jax.lax.rsqrt(var + LN_EPS) * g + beta

    h = conv_relu_ln(x, w1_all, D, b1, g1, be1)                # (BT, F)
    h = conv_relu_ln(h, w2_all, F, b2, g2, be2)                # (BT, F)

    # Linear(F -> 1): VPU multiply + lane reduce (no 1-lane MXU pass)
    e = jnp.sum(h * wl, axis=-1, keepdims=True) + bl           # (BT, 1)

    # quantize(e) into [0, E-1], then clamp((q*gamma + 0.5).int(), 0, E-1);
    # float->int32 cast truncates toward zero, matching torch .int().
    q = (e - rmin) / (rmax - rmin) * (E - 1)
    idx = jnp.clip((q * gamma + 0.5).astype(jnp.int32), 0, E - 1)   # (BT, 1)

    # embedding lookup (one-hot @ table) fused with the residual add
    lanes = jax.lax.broadcasted_iota(jnp.int32, (BT, E), 1)
    onehot = (lanes == idx).astype(jnp.float32)                     # (BT, E)
    out = x + jnp.dot(onehot, emb, preferred_element_type=jnp.float32)
    out_ref[...] = out.astype(out_ref.dtype)                        # one store


# ------------------------------- wrapper -------------------------------------
def energy_regulator(x, params, gamma=1.0):
    """x: (B, T, D) float32. Returns (B, T, D) float32 (inference branch)."""
    B, T, D = x.shape
    (w1, b1, g1, be1, w2, b2, g2, be2, wl, bl, emb) = params
    K, _, F = w1.shape
    E = emb.shape[0]
    BT = B * T
    rmin, rmax = ENERGY_RANGE
    W = max(D, F)

    def padlanes(a):
        a = a.astype(jnp.float32)
        if a.shape[1] == W:
            return a
        return jnp.pad(a, ((0, 0), (0, W - a.shape[1])))

    # ONE packed constant slab (single input DMA): conv1 / conv2 weights in
    # tap-major (K*C, F) order, the 7 per-channel vectors, embedding table.
    vec_pack = jnp.concatenate(
        [b1.reshape(1, F), g1.reshape(1, F), be1.reshape(1, F),
         b2.reshape(1, F), g2.reshape(1, F), be2.reshape(1, F),
         wl.reshape(1, F), jnp.zeros((1, F), jnp.float32)], axis=0)
    consts = jnp.concatenate(
        [padlanes(w1.reshape(K * D, F)),
         padlanes(w2.reshape(K * F, F)),
         padlanes(vec_pack),
         padlanes(emb)], axis=0)
    R = consts.shape[0]

    # gamma is a runtime scalar (SMEM), not baked into the compiled kernel.
    scalars = jnp.stack([jnp.asarray(gamma, jnp.float32),
                         bl.reshape(()).astype(jnp.float32)])

    kernel = functools.partial(
        _energy_regulator_kernel,
        T=T, K=K, pad=(K - 1) // 2, D=D, F=F, E=E,
        rmin=float(rmin), rmax=float(rmax))

    # Advisory cost estimate: conv matmuls + boundary-shift permutation matmuls
    # + one-hot@emb; rsqrt per row per LayerNorm; ~30 KB total traffic.
    flops = int(2 * BT * K * (D * F + F * F)
                + 2 * (K - 1) * BT * BT * (D + F)
                + 2 * BT * E * D
                + 12 * BT * F)
    cost = pl.CostEstimate(
        flops=flops,
        transcendentals=2 * BT,
        bytes_accessed=int(4 * (2 * BT * D + R * W) + 8))

    out_flat = pl.pallas_call(
        kernel,
        out_shape=jax.ShapeDtypeStruct((BT, D), jnp.float32),
        grid_spec=pltpu.PrefetchScalarGridSpec(
            num_scalar_prefetch=0,
            grid=(1,),                                   # single step: tiny problem
            in_specs=[
                pl.BlockSpec(memory_space=pltpu.MemorySpace.SMEM),   # [gamma, bl]
                pl.BlockSpec((BT, D), lambda i: (0, 0)),             # x (flattened)
                pl.BlockSpec((R, W), lambda i: (0, 0)),              # packed consts
            ],
            out_specs=pl.BlockSpec((BT, D), lambda i: (0, 0)),
        ),
        compiler_params=pltpu.CompilerParams(
            dimension_semantics=("arbitrary",)),
        cost_estimate=cost,
    )(scalars, x.reshape(BT, D), consts)
    return out_flat.reshape(B, T, D)


# ----------------------------- pure-JAX reference -----------------------------
def _reference(x, params, gamma=1.0):
    (w1, b1, g1, be1, w2, b2, g2, be2, wl, bl, emb) = params
    B, T, D = x.shape
    K = w1.shape[0]
    E = emb.shape[0]
    pad = (K - 1) // 2
    rmin, rmax = ENERGY_RANGE

    def one(xt):
        def block(inp, w, b, g, beta):
            zp = jnp.zeros((pad, inp.shape[1]), jnp.float32)
            xp = jnp.concatenate([zp, inp, zp], axis=0)
            h = b + sum(xp[k:k + T, :] @ w[k] for k in range(K))
            h = jnp.maximum(h, 0.0)
            mu = jnp.mean(h, axis=-1, keepdims=True)
            var = jnp.mean((h - mu) ** 2, axis=-1, keepdims=True)
            return (h - mu) / jnp.sqrt(var + LN_EPS) * g + beta

        h = block(xt, w1, b1, g1, be1)
        h = block(h, w2, b2, g2, be2)
        e = h @ wl + bl                                   # (T, 1)
        q = (e - rmin) / (rmax - rmin) * (E - 1)
        idx = jnp.clip((q * gamma + 0.5).astype(jnp.int32), 0, E - 1)[:, 0]
        return xt + emb[idx]

    return jax.vmap(one)(x)


# --------------------------------- main ---------------------------------------
def _make_params(key):
    ks = jax.random.split(key, 8)
    D, F, K, E = ENCODER_DIM, FILTER_SIZE, KERNEL_SIZE, ENERGY_DIM
    w1 = 0.2 * jax.random.normal(ks[0], (K, D, F), jnp.float32)
    b1 = jnp.zeros((1, F), jnp.float32)
    g1 = jnp.ones((1, F), jnp.float32)
    be1 = jnp.zeros((1, F), jnp.float32)
    w2 = 0.2 * jax.random.normal(ks[1], (K, F, F), jnp.float32)
    b2 = jnp.zeros((1, F), jnp.float32)
    g2 = jnp.ones((1, F), jnp.float32)
    be2 = jnp.zeros((1, F), jnp.float32)
    wl = 0.3 * jax.random.normal(ks[2], (F, 1), jnp.float32)
    bl = jnp.zeros((1, 1), jnp.float32)
    emb = 0.1 * jax.random.normal(ks[3], (E, D), jnp.float32)
    return (w1, b1, g1, be1, w2, b2, g2, be2, wl, bl, emb)


if __name__ == "__main__":
    key = jax.random.PRNGKey(0)
    kx, kp = jax.random.split(key)
    x = jax.random.normal(kx, (BATCH, SEQ, ENCODER_DIM), jnp.float32)
    params = _make_params(kp)

    out = energy_regulator(x, params, gamma=1.0)
    out = jax.block_until_ready(out)

    ref = _reference(x, params, gamma=1.0)
    assert out.shape == (BATCH, SEQ, ENCODER_DIM)
    assert jnp.allclose(out, ref, atol=1e-4, rtol=1e-4), "mismatch vs JAX reference"

    print("KERNEL_OK")
</pallas_src>

<mosaic_0001>
module attributes {stable_mosaic.version = 11 : i64} {
  func.func @_energy_regulator_kernel(%arg0: i32, %arg1: memref<2xf32, #tpu.memory_space<smem>>, %arg2: memref<16x32xf32, #tpu.memory_space<vmem>>, %arg3: memref<208x32xf32, #tpu.memory_space<vmem>>, %arg4: memref<16x32xf32, #tpu.memory_space<vmem>>) attributes {dimension_semantics = [#tpu.dimension_semantics<arbitrary>], iteration_bounds = array<i64: 1>, scalar_prefetch = 0 : i64, scratch_operands = 0 : i64, tpu.core_type = #tpu.core_type<tc>, window_params = [{transform_indices = @transform_0, window_bounds = array<i64: 2>}, {pipeline_mode = #tpu.pipeline_mode<synchronous>, transform_indices = @transform_1, window_bounds = array<i64: 16, 32>}, {pipeline_mode = #tpu.pipeline_mode<synchronous>, transform_indices = @transform_2, window_bounds = array<i64: 208, 32>}, {pipeline_mode = #tpu.pipeline_mode<synchronous>, transform_indices = @transform_3, window_bounds = array<i64: 16, 32>}]} {
    %c0 = arith.constant 0 : index
    %0 = memref.load %arg1[%c0] : memref<2xf32, #tpu.memory_space<smem>>
    %c1 = arith.constant 1 : index
    %1 = memref.load %arg1[%c1] : memref<2xf32, #tpu.memory_space<smem>>
    %c0_0 = arith.constant 0 : index
    %c0_1 = arith.constant 0 : index
    %2 = vector.load %arg2[%c0_0, %c0_1] : memref<16x32xf32, #tpu.memory_space<vmem>>, vector<16x32xf32>
    %c0_2 = arith.constant 0 : index
    %c0_3 = arith.constant 0 : index
    %3 = vector.load %arg3[%c0_2, %c0_3] : memref<208x32xf32, #tpu.memory_space<vmem>>, vector<96x32xf32>
    %c96 = arith.constant 96 : index
    %c0_4 = arith.constant 0 : index
    %4 = vector.load %arg3[%c96, %c0_4] : memref<208x32xf32, #tpu.memory_space<vmem>>, vector<96x32xf32>
    %c192 = arith.constant 192 : index
    %c0_5 = arith.constant 0 : index
    %5 = vector.load %arg3[%c192, %c0_5] : memref<208x32xf32, #tpu.memory_space<vmem>>, vector<8x32xf32>
    %c200 = arith.constant 200 : index
    %c0_6 = arith.constant 0 : index
    %6 = vector.load %arg3[%c200, %c0_6] : memref<208x32xf32, #tpu.memory_space<vmem>>, vector<8x32xf32>
    %7 = vector.extract_strided_slice %5 {offsets = [0, 0], sizes = [1, 32], strides = [1, 1]} : vector<8x32xf32> to vector<1x32xf32>
    %8 = vector.extract_strided_slice %5 {offsets = [1, 0], sizes = [1, 32], strides = [1, 1]} : vector<8x32xf32> to vector<1x32xf32>
    %9 = vector.extract_strided_slice %5 {offsets = [2, 0], sizes = [1, 32], strides = [1, 1]} : vector<8x32xf32> to vector<1x32xf32>
    %10 = vector.extract_strided_slice %5 {offsets = [3, 0], sizes = [1, 32], strides = [1, 1]} : vector<8x32xf32> to vector<1x32xf32>
    %11 = vector.extract_strided_slice %5 {offsets = [4, 0], sizes = [1, 32], strides = [1, 1]} : vector<8x32xf32> to vector<1x32xf32>
    %12 = vector.extract_strided_slice %5 {offsets = [5, 0], sizes = [1, 32], strides = [1, 1]} : vector<8x32xf32> to vector<1x32xf32>
    %13 = vector.extract_strided_slice %5 {offsets = [6, 0], sizes = [1, 32], strides = [1, 1]} : vector<8x32xf32> to vector<1x32xf32>
    %14 = tpu.iota {dimensions = array<i32: 0>} : vector<16x16xi32>
    %15 = tpu.iota {dimensions = array<i32: 1>} : vector<16x16xi32>
    %c8_i32 = arith.constant 8 : i32
    %c0_i32 = arith.constant 0 : i32
    %16 = arith.cmpi eq, %c8_i32, %c0_i32 : i32
    %c1_i32 = arith.constant 1 : i32
    %17 = arith.select %16, %c1_i32, %c8_i32 : i32
    %18 = vector.broadcast %17 : i32 to vector<16x16xi32>
    %19 = arith.remsi %14, %18 : vector<16x16xi32>
    %c0_i32_7 = arith.constant 0 : i32
    %20 = vector.broadcast %c0_i32_7 : i32 to vector<16x16xi32>
    %21 = arith.cmpi ne, %19, %20 : vector<16x16xi32>
    %c0_i32_8 = arith.constant 0 : i32
    %22 = vector.broadcast %c0_i32_8 : i32 to vector<16x16xi32>
    %23 = arith.cmpi slt, %19, %22 : vector<16x16xi32>
    %c0_i32_9 = arith.constant 0 : i32
    %24 = arith.cmpi slt, %17, %c0_i32_9 : i32
    %25 = vector.broadcast %24 : i1 to vector<16x16xi1>
    %26 = vector.broadcast %25 : vector<16x16xi1> to vector<16x16xi1>
    %27 = arith.xori %23, %26 : vector<16x16xi1>
    %28 = arith.andi %27, %21 : vector<16x16xi1>
    %29 = vector.broadcast %17 : i32 to vector<16x16xi32>
    %30 = arith.addi %19, %29 : vector<16x16xi32>
    %31 = arith.select %28, %30, %19 : vector<16x16xi1>, vector<16x16xi32>
    %c-1_i32 = arith.constant -1 : i32
    %32 = vector.broadcast %c-1_i32 : i32 to vector<16x16xi32>
    %33 = arith.addi %14, %32 : vector<16x16xi32>
    %34 = arith.cmpi eq, %15, %33 : vector<16x16xi32>
    %c-1_i32_10 = arith.constant -1 : i32
    %35 = vector.broadcast %c-1_i32_10 : i32 to vector<16x16xi32>
    %36 = arith.addi %31, %35 : vector<16x16xi32>
    %c0_i32_11 = arith.constant 0 : i32
    %37 = vector.broadcast %c0_i32_11 : i32 to vector<16x16xi32>
    %38 = arith.cmpi sge, %36, %37 : vector<16x16xi32>
    %39 = arith.andi %34, %38 : vector<16x16xi1>
    %c-1_i32_12 = arith.constant -1 : i32
    %40 = vector.broadcast %c-1_i32_12 : i32 to vector<16x16xi32>
    %41 = arith.addi %31, %40 : vector<16x16xi32>
    %c8_i32_13 = arith.constant 8 : i32
    %42 = vector.broadcast %c8_i32_13 : i32 to vector<16x16xi32>
    %43 = arith.cmpi slt, %41, %42 : vector<16x16xi32>
    %44 = arith.andi %39, %43 : vector<16x16xi1>
    %45 = arith.extui %44 : vector<16x16xi1> to vector<16x16xi32>
    %46 = arith.sitofp %45 : vector<16x16xi32> to vector<16x16xf32>
    %47 = tpu.iota {dimensions = array<i32: 0>} : vector<16x16xi32>
    %48 = tpu.iota {dimensions = array<i32: 1>} : vector<16x16xi32>
    %c8_i32_14 = arith.constant 8 : i32
    %c0_i32_15 = arith.constant 0 : i32
    %49 = arith.cmpi eq, %c8_i32_14, %c0_i32_15 : i32
    %c1_i32_16 = arith.constant 1 : i32
    %50 = arith.select %49, %c1_i32_16, %c8_i32_14 : i32
    %51 = vector.broadcast %50 : i32 to vector<16x16xi32>
    %52 = arith.remsi %47, %51 : vector<16x16xi32>
    %c0_i32_17 = arith.constant 0 : i32
    %53 = vector.broadcast %c0_i32_17 : i32 to vector<16x16xi32>
    %54 = arith.cmpi ne, %52, %53 : vector<16x16xi32>
    %c0_i32_18 = arith.constant 0 : i32
    %55 = vector.broadcast %c0_i32_18 : i32 to vector<16x16xi32>
    %56 = arith.cmpi slt, %52, %55 : vector<16x16xi32>
    %c0_i32_19 = arith.constant 0 : i32
    %57 = arith.cmpi slt, %50, %c0_i32_19 : i32
    %58 = vector.broadcast %57 : i1 to vector<16x16xi1>
    %59 = vector.broadcast %58 : vector<16x16xi1> to vector<16x16xi1>
    %60 = arith.xori %56, %59 : vector<16x16xi1>
    %61 = arith.andi %60, %54 : vector<16x16xi1>
    %62 = vector.broadcast %50 : i32 to vector<16x16xi32>
    %63 = arith.addi %52, %62 : vector<16x16xi32>
    %64 = arith.select %61, %63, %52 : vector<16x16xi1>, vector<16x16xi32>
    %c1_i32_20 = arith.constant 1 : i32
    %65 = vector.broadcast %c1_i32_20 : i32 to vector<16x16xi32>
    %66 = arith.addi %47, %65 : vector<16x16xi32>
    %67 = arith.cmpi eq, %48, %66 : vector<16x16xi32>
    %c1_i32_21 = arith.constant 1 : i32
    %68 = vector.broadcast %c1_i32_21 : i32 to vector<16x16xi32>
    %69 = arith.addi %64, %68 : vector<16x16xi32>
    %c0_i32_22 = arith.constant 0 : i32
    %70 = vector.broadcast %c0_i32_22 : i32 to vector<16x16xi32>
    %71 = arith.cmpi sge, %69, %70 : vector<16x16xi32>
    %72 = arith.andi %67, %71 : vector<16x16xi1>
    %c1_i32_23 = arith.constant 1 : i32
    %73 = vector.broadcast %c1_i32_23 : i32 to vector<16x16xi32>
    %74 = arith.addi %64, %73 : vector<16x16xi32>
    %c8_i32_24 = arith.constant 8 : i32
    %75 = vector.broadcast %c8_i32_24 : i32 to vector<16x16xi32>
    %76 = arith.cmpi slt, %74, %75 : vector<16x16xi32>
    %77 = arith.andi %72, %76 : vector<16x16xi1>
    %78 = arith.extui %77 : vector<16x16xi1> to vector<16x16xi32>
    %79 = arith.sitofp %78 : vector<16x16xi32> to vector<16x16xf32>
    %cst = arith.constant dense<0.000000e+00> : vector<16x32xf32>
    %80 = tpu.matmul %46, %2, %cst {dimension_numbers = #tpu.dot_dimension_numbers<[1], [0], [0], [1], [0, 0, 1, 1], [], []>} : vector<16x16xf32>, vector<16x32xf32>, vector<16x32xf32> -> vector<16x32xf32>
    %81 = vector.extract_strided_slice %3 {offsets = [0, 0], sizes = [32, 32], strides = [1, 1]} : vector<96x32xf32> to vector<32x32xf32>
    %cst_25 = arith.constant dense<0.000000e+00> : vector<16x32xf32>
    %82 = tpu.matmul %80, %81, %cst_25 {dimension_numbers = #tpu.dot_dimension_numbers<[1], [0], [0], [1], [0, 0, 1, 1], [], []>} : vector<16x32xf32>, vector<32x32xf32>, vector<16x32xf32> -> vector<16x32xf32>
    %83 = vector.extract_strided_slice %3 {offsets = [32, 0], sizes = [32, 32], strides = [1, 1]} : vector<96x32xf32> to vector<32x32xf32>
    %cst_26 = arith.constant dense<0.000000e+00> : vector<16x32xf32>
    %84 = tpu.matmul %2, %83, %cst_26 {dimension_numbers = #tpu.dot_dimension_numbers<[1], [0], [0], [1], [0, 0, 1, 1], [], []>} : vector<16x32xf32>, vector<32x32xf32>, vector<16x32xf32> -> vector<16x32xf32>
    %85 = arith.addf %82, %84 : vector<16x32xf32>
    %cst_27 = arith.constant dense<0.000000e+00> : vector<16x32xf32>
    %86 = tpu.matmul %79, %2, %cst_27 {dimension_numbers = #tpu.dot_dimension_numbers<[1], [0], [0], [1], [0, 0, 1, 1], [], []>} : vector<16x16xf32>, vector<16x32xf32>, vector<16x32xf32> -> vector<16x32xf32>
    %87 = vector.extract_strided_slice %3 {offsets = [64, 0], sizes = [32, 32], strides = [1, 1]} : vector<96x32xf32> to vector<32x32xf32>
    %cst_28 = arith.constant dense<0.000000e+00> : vector<16x32xf32>
    %88 = tpu.matmul %86, %87, %cst_28 {dimension_numbers = #tpu.dot_dimension_numbers<[1], [0], [0], [1], [0, 0, 1, 1], [], []>} : vector<16x32xf32>, vector<32x32xf32>, vector<16x32xf32> -> vector<16x32xf32>
    %89 = arith.addf %85, %88 : vector<16x32xf32>
    %90 = vector.broadcast %7 : vector<1x32xf32> to vector<16x32xf32>
    %91 = arith.addf %89, %90 : vector<16x32xf32>
    %cst_29 = arith.constant 0.000000e+00 : f32
    %92 = vector.broadcast %cst_29 : f32 to vector<16x32xf32>
    %93 = arith.maximumf %91, %92 : vector<16x32xf32>
    %cst_30 = arith.constant dense<0.000000e+00> : vector<16xf32>
    %94 = vector.multi_reduction <add>, %93, %cst_30 [1] : vector<16x32xf32> to vector<16xf32>
    %95 = vector.shape_cast %94 : vector<16xf32> to vector<16x1xf32>
    %cst_31 = arith.constant 3.200000e+01 : f32
    %96 = vector.broadcast %cst_31 : f32 to vector<16x1xf32>
    %97 = arith.divf %95, %96 : vector<16x1xf32>
    %98 = vector.broadcast %97 : vector<16x1xf32> to vector<16x32xf32>
    %99 = arith.subf %93, %98 : vector<16x32xf32>
    %100 = vector.broadcast %97 : vector<16x1xf32> to vector<16x32xf32>
    %101 = arith.subf %93, %100 : vector<16x32xf32>
    %102 = arith.mulf %99, %101 : vector<16x32xf32>
    %cst_32 = arith.constant dense<0.000000e+00> : vector<16xf32>
    %103 = vector.multi_reduction <add>, %102, %cst_32 [1] : vector<16x32xf32> to vector<16xf32>
    %104 = vector.shape_cast %103 : vector<16xf32> to vector<16x1xf32>
    %cst_33 = arith.constant 3.200000e+01 : f32
    %105 = vector.broadcast %cst_33 : f32 to vector<16x1xf32>
    %106 = arith.divf %104, %105 : vector<16x1xf32>
    %107 = vector.broadcast %97 : vector<16x1xf32> to vector<16x32xf32>
    %108 = arith.subf %93, %107 : vector<16x32xf32>
    %cst_34 = arith.constant 9.99999974E-6 : f32
    %109 = vector.broadcast %cst_34 : f32 to vector<16x1xf32>
    %110 = arith.addf %106, %109 : vector<16x1xf32>
    %111 = math.rsqrt %110 : vector<16x1xf32>
    %112 = vector.broadcast %111 : vector<16x1xf32> to vector<16x32xf32>
    %113 = arith.mulf %108, %112 : vector<16x32xf32>
    %114 = vector.broadcast %8 : vector<1x32xf32> to vector<16x32xf32>
    %115 = arith.mulf %113, %114 : vector<16x32xf32>
    %116 = vector.broadcast %9 : vector<1x32xf32> to vector<16x32xf32>
    %117 = arith.addf %115, %116 : vector<16x32xf32>
    %cst_35 = arith.constant dense<0.000000e+00> : vector<16x32xf32>
    %118 = tpu.matmul %46, %117, %cst_35 {dimension_numbers = #tpu.dot_dimension_numbers<[1], [0], [0], [1], [0, 0, 1, 1], [], []>} : vector<16x16xf32>, vector<16x32xf32>, vector<16x32xf32> -> vector<16x32xf32>
    %119 = vector.extract_strided_slice %4 {offsets = [0, 0], sizes = [32, 32], strides = [1, 1]} : vector<96x32xf32> to vector<32x32xf32>
    %cst_36 = arith.constant dense<0.000000e+00> : vector<16x32xf32>
    %120 = tpu.matmul %118, %119, %cst_36 {dimension_numbers = #tpu.dot_dimension_numbers<[1], [0], [0], [1], [0, 0, 1, 1], [], []>} : vector<16x32xf32>, vector<32x32xf32>, vector<16x32xf32> -> vector<16x32xf32>
    %121 = vector.extract_strided_slice %4 {offsets = [32, 0], sizes = [32, 32], strides = [1, 1]} : vector<96x32xf32> to vector<32x32xf32>
    %cst_37 = arith.constant dense<0.000000e+00> : vector<16x32xf32>
    %122 = tpu.matmul %117, %121, %cst_37 {dimension_numbers = #tpu.dot_dimension_numbers<[1], [0], [0], [1], [0, 0, 1, 1], [], []>} : vector<16x32xf32>, vector<32x32xf32>, vector<16x32xf32> -> vector<16x32xf32>
    %123 = arith.addf %120, %122 : vector<16x32xf32>
    %cst_38 = arith.constant dense<0.000000e+00> : vector<16x32xf32>
    %124 = tpu.matmul %79, %117, %cst_38 {dimension_numbers = #tpu.dot_dimension_numbers<[1], [0], [0], [1], [0, 0, 1, 1], [], []>} : vector<16x16xf32>, vector<16x32xf32>, vector<16x32xf32> -> vector<16x32xf32>
    %125 = vector.extract_strided_slice %4 {offsets = [64, 0], sizes = [32, 32], strides = [1, 1]} : vector<96x32xf32> to vector<32x32xf32>
    %cst_39 = arith.constant dense<0.000000e+00> : vector<16x32xf32>
    %126 = tpu.matmul %124, %125, %cst_39 {dimension_numbers = #tpu.dot_dimension_numbers<[1], [0], [0], [1], [0, 0, 1, 1], [], []>} : vector<16x32xf32>, vector<32x32xf32>, vector<16x32xf32> -> vector<16x32xf32>
    %127 = arith.addf %123, %126 : vector<16x32xf32>
    %128 = vector.broadcast %10 : vector<1x32xf32> to vector<16x32xf32>
    %129 = arith.addf %127, %128 : vector<16x32xf32>
    %cst_40 = arith.constant 0.000000e+00 : f32
    %130 = vector.broadcast %cst_40 : f32 to vector<16x32xf32>
    %131 = arith.maximumf %129, %130 : vector<16x32xf32>
    %cst_41 = arith.constant dense<0.000000e+00> : vector<16xf32>
    %132 = vector.multi_reduction <add>, %131, %cst_41 [1] : vector<16x32xf32> to vector<16xf32>
    %133 = vector.shape_cast %132 : vector<16xf32> to vector<16x1xf32>
    %cst_42 = arith.constant 3.200000e+01 : f32
    %134 = vector.broadcast %cst_42 : f32 to vector<16x1xf32>
    %135 = arith.divf %133, %134 : vector<16x1xf32>
    %136 = vector.broadcast %135 : vector<16x1xf32> to vector<16x32xf32>
    %137 = arith.subf %131, %136 : vector<16x32xf32>
    %138 = vector.broadcast %135 : vector<16x1xf32> to vector<16x32xf32>
    %139 = arith.subf %131, %138 : vector<16x32xf32>
    %140 = arith.mulf %137, %139 : vector<16x32xf32>
    %cst_43 = arith.constant dense<0.000000e+00> : vector<16xf32>
    %141 = vector.multi_reduction <add>, %140, %cst_43 [1] : vector<16x32xf32> to vector<16xf32>
    %142 = vector.shape_cast %141 : vector<16xf32> to vector<16x1xf32>
    %cst_44 = arith.constant 3.200000e+01 : f32
    %143 = vector.broadcast %cst_44 : f32 to vector<16x1xf32>
    %144 = arith.divf %142, %143 : vector<16x1xf32>
    %145 = vector.broadcast %135 : vector<16x1xf32> to vector<16x32xf32>
    %146 = arith.subf %131, %145 : vector<16x32xf32>
    %cst_45 = arith.constant 9.99999974E-6 : f32
    %147 = vector.broadcast %cst_45 : f32 to vector<16x1xf32>
    %148 = arith.addf %144, %147 : vector<16x1xf32>
    %149 = math.rsqrt %148 : vector<16x1xf32>
    %150 = vector.broadcast %149 : vector<16x1xf32> to vector<16x32xf32>
    %151 = arith.mulf %146, %150 : vector<16x32xf32>
    %152 = vector.broadcast %11 : vector<1x32xf32> to vector<16x32xf32>
    %153 = arith.mulf %151, %152 : vector<16x32xf32>
    %154 = vector.broadcast %12 : vector<1x32xf32> to vector<16x32xf32>
    %155 = arith.addf %153, %154 : vector<16x32xf32>
    %156 = vector.broadcast %13 : vector<1x32xf32> to vector<16x32xf32>
    %157 = arith.mulf %155, %156 : vector<16x32xf32>
    %cst_46 = arith.constant dense<0.000000e+00> : vector<16xf32>
    %158 = vector.multi_reduction <add>, %157, %cst_46 [1] : vector<16x32xf32> to vector<16xf32>
    %159 = vector.shape_cast %158 : vector<16xf32> to vector<16x1xf32>
    %160 = vector.broadcast %1 : f32 to vector<16x1xf32>
    %161 = arith.addf %159, %160 : vector<16x1xf32>
    %cst_47 = arith.constant -1.000000e+00 : f32
    %162 = vector.broadcast %cst_47 : f32 to vector<16x1xf32>
    %163 = arith.subf %161, %162 : vector<16x1xf32>
    %cst_48 = arith.constant 2.000000e+00 : f32
    %164 = vector.broadcast %cst_48 : f32 to vector<16x1xf32>
    %165 = arith.divf %163, %164 : vector<16x1xf32>
    %cst_49 = arith.constant 7.000000e+00 : f32
    %166 = vector.broadcast %cst_49 : f32 to vector<16x1xf32>
    %167 = arith.mulf %165, %166 : vector<16x1xf32>
    %168 = vector.broadcast %0 : f32 to vector<16x1xf32>
    %169 = arith.mulf %167, %168 : vector<16x1xf32>
    %cst_50 = arith.constant 5.000000e-01 : f32
    %170 = vector.broadcast %cst_50 : f32 to vector<16x1xf32>
    %171 = arith.addf %169, %170 : vector<16x1xf32>
    %172 = arith.fptosi %171 : vector<16x1xf32> to vector<16x1xi32>
    %c0_i32_51 = arith.constant 0 : i32
    %c7_i32 = arith.constant 7 : i32
    %173 = vector.broadcast %c0_i32_51 : i32 to vector<16x1xi32>
    %174 = arith.maxsi %173, %172 : vector<16x1xi32>
    %175 = vector.broadcast %c7_i32 : i32 to vector<16x1xi32>
    %176 = arith.minsi %175, %174 : vector<16x1xi32>
    %177 = tpu.iota {dimensions = array<i32: 1>} : vector<16x8xi32>
    %178 = vector.broadcast %176 : vector<16x1xi32> to vector<16x8xi32>
    %179 = arith.cmpi eq, %177, %178 : vector<16x8xi32>
    %180 = arith.extui %179 : vector<16x8xi1> to vector<16x8xi32>
    %181 = arith.sitofp %180 : vector<16x8xi32> to vector<16x8xf32>
    %cst_52 = arith.constant dense<0.000000e+00> : vector<16x32xf32>
    %182 = tpu.matmul %181, %6, %cst_52 {dimension_numbers = #tpu.dot_dimension_numbers<[1], [0], [0], [1], [0, 0, 1, 1], [], []>} : vector<16x8xf32>, vector<8x32xf32>, vector<16x32xf32> -> vector<16x32xf32>
    %183 = arith.addf %2, %182 : vector<16x32xf32>
    %c0_53 = arith.constant 0 : index
    %c0_54 = arith.constant 0 : index
    %184 = vector.load %arg4[%c0_53, %c0_54] : memref<16x32xf32, #tpu.memory_space<vmem>>, vector<16x32xf32>
    tpu.vector_store %arg4[%c0_53, %c0_54], %183 {strides = array<i32>} : memref<16x32xf32, #tpu.memory_space<vmem>>, vector<16x32xf32>,
    return
  }
  func.func @transform_0(%arg0: i32) -> i32 {
    %c0_i32 = arith.constant 0 : i32
    %c0_i32_0 = arith.constant 0 : i32
    return %c0_i32 : i32
  }
  func.func @transform_1(%arg0: i32) -> (i32, i32) {
    %c0_i32 = arith.constant 0 : i32
    %c0_i32_0 = arith.constant 0 : i32
    %c0_i32_1 = arith.constant 0 : i32
    return %c0_i32, %c0_i32_0 : i32, i32
  }
  func.func @transform_2(%arg0: i32) -> (i32, i32) {
    %c0_i32 = arith.constant 0 : i32
    %c0_i32_0 = arith.constant 0 : i32
    %c0_i32_1 = arith.constant 0 : i32
    return %c0_i32, %c0_i32_0 : i32, i32
  }
  func.func @transform_3(%arg0: i32) -> (i32, i32) {
    %c0_i32 = arith.constant 0 : i32
    %c0_i32_0 = arith.constant 0 : i32
    %c0_i32_1 = arith.constant 0 : i32
    return %c0_i32, %c0_i32_0 : i32, i32
  }
}

</mosaic_0001>

<llo_original>
// kernel: tpu_custom_call.1
$region0: #{tpu_custom_call.1}
  #allocation0 [shape = 'u32[]', space=smem, size = 0x4, offset = 0x4, fixed_abs, tag = 'smem constant byte address 0x4 - core index']
  #allocation1 [shape = 'u32[144,128]{1,0:T(1,128)}', space=vmem, size = 0x12000, scoped, tag = 'internal scratch']
  %s0 = inlined_call_operand.vmem [shape: f32[2], index: 0, kind: input, shape index: {}]
  %s1 = inlined_call_operand.vmem [shape: f32[16,32], index: 1, kind: input, shape index: {}]
  %s2 = inlined_call_operand.vmem [shape: f32[208,32], index: 2, kind: input, shape index: {}]
  %s3 = inlined_call_operand.hbm [shape: f32[16,32], index: 3, kind: output, shape index: {}]
  %s4 = sld [smem:[#allocation0]]
  $region26: #{tpu_custom_call.1} parent=0
    _
  %s6 = ssub.s32 1, %s4
  %s7 = scalar_select 0, %s6, %s4
  $region1: #{tpu_custom_call.1} parent=0
    #allocation2 [shape = 'u8[512]{0}', space=smem, size = 0x200, scoped, tag = 'input window, operand 0, single buffered']
    #allocation3 [shape = 's32[1]{0}', space=sflag, size = 0x4, scoped, tag = 'scoped memory for tpu_custom_call.1']
    #allocation4 [shape = 's32[1]{0}', space=sflag, size = 0x4, scoped, tag = 'scoped memory for tpu_custom_call.1']
    #allocation5 [shape = 'u8[8192]{0}', space=vmem, size = 0x2000, scoped, tag = 'output window, operand 0, single buffered']
    %8 = vsyncpa [#allocation4], 0
    %9 = vsyncpa [#allocation3], 0
    // Predicated region
    $region2: #{tpu_custom_call.1} parent=1 // pred_check
      _
    $region3: #{tpu_custom_call.1} parent=1 // pred_check_branch
      %11 = sbr.rel (0) target = $region5
    $region4: #{tpu_custom_call.1} parent=1 // pred_region
      %s13 = ssub.s32 16, 16
      %14 = vsyncadd [#allocation4], %s13
      %s16 = sshll.u32 %s0, 4
      %s17 = int_to_ptr.vmem [resolvable:$true] %s16
      %19 = dma.vmem_to_smem %s17, 16, [#allocation2], [#allocation4]
    $region5: #{tpu_custom_call.1} parent=1 // pred_fallthru
      _
    // Predicated region
    $region6: #{tpu_custom_call.1} parent=1 // pred_check
      _
    $region7: #{tpu_custom_call.1} parent=1 // pred_check_branch
      %21 = sbr.rel (0) target = $region9
    $region8: #{tpu_custom_call.1} parent=1 // pred_region
      _
    $region9: #{tpu_custom_call.1} parent=1 // pred_fallthru
      _
    // Predicated region
    $region10: #{tpu_custom_call.1} parent=1 // pred_check
      _
    $region11: #{tpu_custom_call.1} parent=1 // pred_check_branch
      %23 = sbr.rel (0) target = $region13
    $region12: #{tpu_custom_call.1} parent=1 // pred_region
      _
    $region13: #{tpu_custom_call.1} parent=1 // pred_fallthru
      _
    // Predicated region
    $region14: #{tpu_custom_call.1} parent=1 // pred_check
      _
    $region15: #{tpu_custom_call.1} parent=1 // pred_check_branch
      %25 = sbr.rel (0) target = $region17
    $region16: #{tpu_custom_call.1} parent=1 // pred_region
      %26 = dma.done [#allocation4], 16
    $region17: #{tpu_custom_call.1} parent=1 // pred_fallthru
      _
    %27 = sfence
    %s28 = sld [smem:[#allocation2]]
    %s29 = sld [smem:[#allocation2 + $0x1]]
    %v30 = vld [vmem:[%s1] sm:$0xff]
    %v31 = vld [vmem:[%s1 + $0x8] sm:$0xff]
    %v32 = vld [vmem:[%s2] sm:$0xff]
    %v33 = vld [vmem:[%s2 + $0x8] sm:$0xff]
    %v34 = vld [vmem:[%s2 + $0x10] sm:$0xff]
    %v35 = vld [vmem:[%s2 + $0x18] sm:$0xff]
    %v36 = vld [vmem:[%s2 + $0x20] sm:$0xff]
    %v37 = vld [vmem:[%s2 + $0x28] sm:$0xff]
    %v38 = vld [vmem:[%s2 + $0x30] sm:$0xff]
    %v39 = vld [vmem:[%s2 + $0x38] sm:$0xff]
    %v40 = vld [vmem:[%s2 + $0x40] sm:$0xff]
    %v41 = vld [vmem:[%s2 + $0x48] sm:$0xff]
    %v42 = vld [vmem:[%s2 + $0x50] sm:$0xff]
    %v43 = vld [vmem:[%s2 + $0x58] sm:$0xff]
    %v44 = vld [vmem:[%s2 + $0x60] sm:$0xff]
    %v45 = vld [vmem:[%s2 + $0x68] sm:$0xff]
    %v46 = vld [vmem:[%s2 + $0x70] sm:$0xff]
    %v47 = vld [vmem:[%s2 + $0x78] sm:$0xff]
    %v48 = vld [vmem:[%s2 + $0x80] sm:$0xff]
    %v49 = vld [vmem:[%s2 + $0x88] sm:$0xff]
    %v50 = vld [vmem:[%s2 + $0x90] sm:$0xff]
    %v51 = vld [vmem:[%s2 + $0x98] sm:$0xff]
    %v52 = vld [vmem:[%s2 + $0xa0] sm:$0xff]
    %v53 = vld [vmem:[%s2 + $0xa8] sm:$0xff]
    %v54 = vld [vmem:[%s2 + $0xb0] sm:$0xff]
    %v55 = vld [vmem:[%s2 + $0xb8] sm:$0xff]
    %v56 = vld [vmem:[%s2 + $0xc0] sm:$0xff]
    %v57 = vld [vmem:[%s2 + $0xc8] sm:$0xff]
    %v58 = vlaneseq
    %v59 = vshrl.u32 %v58, 7
    %v60 = vadd.s32 %v59, 8
    %v61 = vlaneseq
    %v62 = vand.u32 %v61, 127
    %vm63 = vcmp.lt.s32.totalorder %v59, 0
    %v64 = vsub.s32 0, %v59
    %v65 = vsel %vm63, %v64, %v59
    %v66 = vshrl.u32 %v65, 3
    %v67 = vand.u32 %v65, 7
    %v68 = vsub.s32 0, %v67
    %v69 = vsel %vm63, %v68, %v67
    %vm70 = vcmp.lt.s32.totalorder %v60, 0
    %v71 = vsub.s32 0, %v60
    %v72 = vsel %vm70, %v71, %v60
    %v73 = vshrl.u32 %v72, 3
    %v74 = vand.u32 %v72, 7
    %v75 = vsub.s32 0, %v74
    %v76 = vsel %vm70, %v75, %v74
    %vm77 = vcmp.ne.s32.totalorder %v69, 0
    %vm78 = vcmp.ne.s32.totalorder %v76, 0
    %vm79 = vcmp.lt.s32.totalorder %v69, 0
    %vm80 = vcmp.lt.s32.totalorder %v76, 0
    %vm81 = vmand %vm79, %vm77
    %vm82 = vmand %vm80, %vm78
    %v83 = vadd.s32 %v69, 8
    %v84 = vadd.s32 %v76, 8
    %v85 = vsel %vm81, %v83, %v69
    %v86 = vsel %vm82, %v84, %v76
    %v87 = vadd.s32 %v59, 4294967295
    %v88 = vadd.s32 %v60, 4294967295
    %vm89 = vcmp.eq.s32.totalorder %v62, %v87
    %vm90 = vcmp.eq.s32.totalorder %v62, %v88
    %v91 = vadd.s32 %v85, 4294967295
    %v92 = vadd.s32 %v86, 4294967295
    %vm93 = vcmp.ge.s32.totalorder %v91, 0
    %vm94 = vcmp.ge.s32.totalorder %v92, 0
    %vm95 = vmand %vm89, %vm93
    %vm96 = vmand %vm90, %vm94
    %vm97 = vcmp.lt.s32.totalorder %v91, 8
    %vm98 = vcmp.lt.s32.totalorder %v92, 8
    %vm99 = vmand %vm95, %vm97
    %vm100 = vmand %vm96, %vm98
    %v101 = vsel %vm99, 1, 0
    %v102 = vsel %vm100, 1, 0
    %v103 = vcvt.s32.f32 %v101
    %v104 = vcvt.s32.f32 %v102
    %v105 = vadd.s32 %v59, 1
    %v106 = vadd.s32 %v60, 1
    %vm107 = vcmp.eq.s32.totalorder %v62, %v105
    %vm108 = vcmp.eq.s32.totalorder %v62, %v106
    %v109 = vadd.s32 %v85, 1
    %v110 = vadd.s32 %v86, 1
    %vm111 = vcmp.ge.s32.totalorder %v109, 0
    %vm112 = vcmp.ge.s32.totalorder %v110, 0
    %vm113 = vmand %vm107, %vm111
    %vm114 = vmand %vm108, %vm112
    %vm115 = vcmp.lt.s32.totalorder %v109, 8
    %vm116 = vcmp.lt.s32.totalorder %v110, 8
    %vm117 = vmand %vm113, %vm115
    %vm118 = vmand %vm114, %vm116
    %v119 = vsel %vm117, 1, 0
    %v120 = vsel %vm118, 1, 0
    %v121 = vcvt.s32.f32 %v119
    %v122 = vcvt.s32.f32 %v120
    %vm123 = vcmask 130048
    %v125 = vsel %vm123, %v103, 0
    %v128 = vsel %vm123, %v104, 0
    %130 = vmatprep.subr.mxu0 0.0
    %131 = vmatpush1.msra.mxu0 %v30
    %132 = vmatprep.subr.mxu0 0.0
    %133 = vmatpush1.msra.mxu0 %v31
    %134 = vmatprep.subr.mxu0 0.0
    %135 = vmatpush1.msra.mxu0 0.0
    %136 = vmatprep.subr.mxu0 0.0
    %137 = vmatpush1.msra.mxu0 0.0
    %138 = vmatprep.subr.mxu0 0.0
    %139 = vmatpush1.msra.mxu0 0.0
    %140 = vmatprep.subr.mxu0 0.0
    %141 = vmatpush1.msra.mxu0 0.0
    %142 = vmatprep.subr.mxu0 0.0
    %143 = vmatpush1.msra.mxu0 0.0
    %144 = vmatprep.subr.mxu0 0.0
    %145 = vmatpush1.msra.mxu0 0.0
    %146 = vmatprep.subr.mxu0 0.0
    %147 = vmatpush1.msra.mxu0 0.0
    %148 = vmatprep.subr.mxu0 0.0
    %149 = vmatpush1.msra.mxu0 0.0
    %150 = vmatprep.subr.mxu0 0.0
    %151 = vmatpush1.msra.mxu0 0.0
    %152 = vmatprep.subr.mxu0 0.0
    %153 = vmatpush1.msra.mxu0 0.0
    %154 = vmatprep.subr.mxu0 0.0
    %155 = vmatpush1.msra.mxu0 0.0
    %156 = vmatprep.subr.mxu0 0.0
    %157 = vmatpush1.msra.mxu0 0.0
    %158 = vmatprep.subr.mxu0 0.0
    %159 = vmatpush1.msra.mxu0 0.0
    %160 = vmatprep.subr.mxu0 0.0
    %161 = vmatpush1.msra.mxu0 0.0
    %162 = vmatprep.subr.mxu0 0.0
    %163 = vmatpush1.msra.mxu0 0.0
    %164 = vmatprep.subr.mxu0 0.0
    %165 = vmatpush1.msra.mxu0 0.0
    %166 = vmatprep.subr.mxu0 0.0
    %167 = vmatpush1.msra.mxu0 0.0
    %168 = vmatprep.subr.mxu0 0.0
    %169 = vmatpush1.msra.mxu0 0.0
    %170 = vmatprep.subr.mxu0 0.0
    %171 = vmatpush1.msra.mxu0 0.0
    %172 = vmatprep.subr.mxu0 0.0
    %173 = vmatpush1.msra.mxu0 0.0
    %174 = vmatprep.subr.mxu0 0.0
    %175 = vmatpush1.msra.mxu0 0.0
    %176 = vmatprep.subr.mxu0 0.0
    %177 = vmatpush1.msra.mxu0 0.0
    %178 = vmatprep.subr.mxu0 0.0
    %179 = vmatpush1.msra.mxu0 0.0
    %180 = vmatprep.subr.mxu0 0.0
    %181 = vmatpush1.msra.mxu0 0.0
    %182 = vmatprep.subr.mxu0 0.0
    %183 = vmatpush1.msra.mxu0 0.0
    %184 = vmatprep.subr.mxu0 0.0
    %185 = vmatpush1.msra.mxu0 0.0
    %186 = vmatprep.subr.mxu0 0.0
    %187 = vmatpush1.msra.mxu0 0.0
    %188 = vmatprep.subr.mxu0 0.0
    %189 = vmatpush1.msra.mxu0 0.0
    %190 = vmatprep.subr.mxu0 0.0
    %191 = vmatpush1.msra.mxu0 0.0
    %192 = vmatprep.subr.mxu0 0.0
    %193 = vmatpush1.msra.mxu0 0.0
    %194 = vmatprep.mubr.f32.mxu0 0.0
    %195 = vmatmul.mubr.f32.gmra.mrb[0].mxu0 %v125
    %v196 = vpop.f32.mrb[0].mxu0
    %v197 = vadd.f32 0.0, %v196
    %v198 = vpop.f32.mrb[0].mxu0
    %199 = vmatprep.mubr.f32.mxu0 0.0
    %200 = vmatmul.mubr.f32.gmra.mrb[0].mxu0 %v128
    %v201 = vpop.f32.mrb[0].mxu0
    %v202 = vadd.f32 0.0, %v201
    %v203 = vpop.f32.mrb[0].mxu0
    %204 = vdwg.mxu0
    %vm205 = vcmask 261120
    %v207 = vsel %vm205, %v30, 0
    %v210 = vsel %vm205, %v31, 0
    %212 = vmatprep.subr.mxu0 0.0
    %213 = vmatpush1.msra.mxu0 %v36
    %214 = vmatprep.subr.mxu0 0.0
    %215 = vmatpush1.msra.mxu0 %v37
    %216 = vmatprep.subr.mxu0 0.0
    %217 = vmatpush1.msra.mxu0 %v38
    %218 = vmatprep.subr.mxu0 0.0
    %219 = vmatpush1.msra.mxu0 %v39
    %220 = vmatprep.subr.mxu0 0.0
    %221 = vmatpush1.msra.mxu0 0.0
    %222 = vmatprep.subr.mxu0 0.0
    %223 = vmatpush1.msra.mxu0 0.0
    %224 = vmatprep.subr.mxu0 0.0
    %225 = vmatpush1.msra.mxu0 0.0
    %226 = vmatprep.subr.mxu0 0.0
    %227 = vmatpush1.msra.mxu0 0.0
    %228 = vmatprep.subr.mxu0 0.0
    %229 = vmatpush1.msra.mxu0 0.0
    %230 = vmatprep.subr.mxu0 0.0
    %231 = vmatpush1.msra.mxu0 0.0
    %232 = vmatprep.subr.mxu0 0.0
    %233 = vmatpush1.msra.mxu0 0.0
    %234 = vmatprep.subr.mxu0 0.0
    %235 = vmatpush1.msra.mxu0 0.0
    %236 = vmatprep.subr.mxu0 0.0
    %237 = vmatpush1.msra.mxu0 0.0
    %238 = vmatprep.subr.mxu0 0.0
    %239 = vmatpush1.msra.mxu0 0.0
    %240 = vmatprep.subr.mxu0 0.0
    %241 = vmatpush1.msra.mxu0 0.0
    %242 = vmatprep.subr.mxu0 0.0
    %243 = vmatpush1.msra.mxu0 0.0
    %244 = vmatprep.subr.mxu0 0.0
    %245 = vmatpush1.msra.mxu0 0.0
    %246 = vmatprep.subr.mxu0 0.0
    %247 = vmatpush1.msra.mxu0 0.0
    %248 = vmatprep.subr.mxu0 0.0
    %249 = vmatpush1.msra.mxu0 0.0
    %250 = vmatprep.subr.mxu0 0.0
    %251 = vmatpush1.msra.mxu0 0.0
    %252 = vmatprep.subr.mxu0 0.0
    %253 = vmatpush1.msra.mxu0 0.0
    %254 = vmatprep.subr.mxu0 0.0
    %255 = vmatpush1.msra.mxu0 0.0
    %256 = vmatprep.subr.mxu0 0.0
    %257 = vmatpush1.msra.mxu0 0.0
    %258 = vmatprep.subr.mxu0 0.0
    %259 = vmatpush1.msra.mxu0 0.0
    %260 = vmatprep.subr.mxu0 0.0
    %261 = vmatpush1.msra.mxu0 0.0
    %262 = vmatprep.subr.mxu0 0.0
    %263 = vmatpush1.msra.mxu0 0.0
    %264 = vmatprep.subr.mxu0 0.0
    %265 = vmatpush1.msra.mxu0 0.0
    %266 = vmatprep.subr.mxu0 0.0
    %267 = vmatpush1.msra.mxu0 0.0
    %268 = vmatprep.subr.mxu0 0.0
    %269 = vmatpush1.msra.mxu0 0.0
    %270 = vmatprep.subr.mxu0 0.0
    %271 = vmatpush1.msra.mxu0 0.0
    %272 = vmatprep.subr.mxu0 0.0
    %273 = vmatpush1.msra.mxu0 0.0
    %274 = vmatprep.subr.mxu0 0.0
    %275 = vmatpush1.msra.mxu0 0.0
    %276 = vmatprep.mubr.f32.mxu0 0.0
    %277 = vmatmul.mubr.f32.gmra.mrb[0].mxu0 %v207
    %v278 = vpop.f32.mrb[0].mxu0
    %v279 = vadd.f32 0.0, %v278
    %v280 = vpop.f32.mrb[0].mxu0
    %281 = vmatprep.mubr.f32.mxu0 0.0
    %282 = vmatmul.mubr.f32.gmra.mrb[0].mxu0 %v210
    %v283 = vpop.f32.mrb[0].mxu0
    %v284 = vadd.f32 0.0, %v283
    %v285 = vpop.f32.mrb[0].mxu0
    %286 = vdwg.mxu0
    %v288 = vsel %vm205, %v197, 0
    %v291 = vsel %vm205, %v202, 0
    %293 = vmatprep.subr.mxu0 0.0
    %294 = vmatpush1.msra.mxu0 %v32
    %295 = vmatprep.subr.mxu0 0.0
    %296 = vmatpush1.msra.mxu0 %v33
    %297 = vmatprep.subr.mxu0 0.0
    %298 = vmatpush1.msra.mxu0 %v34
    %299 = vmatprep.subr.mxu0 0.0
    %300 = vmatpush1.msra.mxu0 %v35
    %301 = vmatprep.subr.mxu0 0.0
    %302 = vmatpush1.msra.mxu0 0.0
    %303 = vmatprep.subr.mxu0 0.0
    %304 = vmatpush1.msra.mxu0 0.0
    %305 = vmatprep.subr.mxu0 0.0
    %306 = vmatpush1.msra.mxu0 0.0
    %307 = vmatprep.subr.mxu0 0.0
    %308 = vmatpush1.msra.mxu0 0.0
    %309 = vmatprep.subr.mxu0 0.0
    %310 = vmatpush1.msra.mxu0 0.0
    %311 = vmatprep.subr.mxu0 0.0
    %312 = vmatpush1.msra.mxu0 0.0
    %313 = vmatprep.subr.mxu0 0.0
    %314 = vmatpush1.msra.mxu0 0.0
    %315 = vmatprep.subr.mxu0 0.0
    %316 = vmatpush1.msra.mxu0 0.0
    %317 = vmatprep.subr.mxu0 0.0
    %318 = vmatpush1.msra.mxu0 0.0
    %319 = vmatprep.subr.mxu0 0.0
    %320 = vmatpush1.msra.mxu0 0.0
    %321 = vmatprep.subr.mxu0 0.0
    %322 = vmatpush1.msra.mxu0 0.0
    %323 = vmatprep.subr.mxu0 0.0
    %324 = vmatpush1.msra.mxu0 0.0
    %325 = vmatprep.subr.mxu0 0.0
    %326 = vmatpush1.msra.mxu0 0.0
    %327 = vmatprep.subr.mxu0 0.0
    %328 = vmatpush1.msra.mxu0 0.0
    %329 = vmatprep.subr.mxu0 0.0
    %330 = vmatpush1.msra.mxu0 0.0
    %331 = vmatprep.subr.mxu0 0.0
    %332 = vmatpush1.msra.mxu0 0.0
    %333 = vmatprep.subr.mxu0 0.0
    %334 = vmatpush1.msra.mxu0 0.0
    %335 = vmatprep.subr.mxu0 0.0
    %336 = vmatpush1.msra.mxu0 0.0
    %337 = vmatprep.subr.mxu0 0.0
    %338 = vmatpush1.msra.mxu0 0.0
    %339 = vmatprep.subr.mxu0 0.0
    %340 = vmatpush1.msra.mxu0 0.0
    %341 = vmatprep.subr.mxu0 0.0
    %342 = vmatpush1.msra.mxu0 0.0
    %343 = vmatprep.subr.mxu0 0.0
    %344 = vmatpush1.msra.mxu0 0.0
    %345 = vmatprep.subr.mxu0 0.0
    %346 = vmatpush1.msra.mxu0 0.0
    %347 = vmatprep.subr.mxu0 0.0
    %348 = vmatpush1.msra.mxu0 0.0
    %349 = vmatprep.subr.mxu0 0.0
    %350 = vmatpush1.msra.mxu0 0.0
    %351 = vmatprep.subr.mxu0 0.0
    %352 = vmatpush1.msra.mxu0 0.0
    %353 = vmatprep.subr.mxu0 0.0
    %354 = vmatpush1.msra.mxu0 0.0
    %355 = vmatprep.subr.mxu0 0.0
    %356 = vmatpush1.msra.mxu0 0.0
    %357 = vmatprep.mubr.f32.mxu0 0.0
    %358 = vmatmul.mubr.f32.gmra.mrb[0].mxu0 %v288
    %v359 = vpop.f32.mrb[0].mxu0
    %v360 = vadd.f32 %v279, %v359
    %v361 = vpop.f32.mrb[0].mxu0
    %362 = vmatprep.mubr.f32.mxu0 0.0
    %363 = vmatmul.mubr.f32.gmra.mrb[0].mxu0 %v291
    %v364 = vpop.f32.mrb[0].mxu0
    %v365 = vadd.f32 %v284, %v364
    %v366 = vpop.f32.mrb[0].mxu0
    %367 = vdwg.mxu0
    %v369 = vsel %vm123, %v121, 0
    %v372 = vsel %vm123, %v122, 0
    %374 = vmatprep.subr.mxu0 0.0
    %375 = vmatpush1.msra.mxu0 %v30
    %376 = vmatprep.subr.mxu0 0.0
    %377 = vmatpush1.msra.mxu0 %v31
    %378 = vmatprep.subr.mxu0 0.0
    %379 = vmatpush1.msra.mxu0 0.0
    %380 = vmatprep.subr.mxu0 0.0
    %381 = vmatpush1.msra.mxu0 0.0
    %382 = vmatprep.subr.mxu0 0.0
    %383 = vmatpush1.msra.mxu0 0.0
    %384 = vmatprep.subr.mxu0 0.0
    %385 = vmatpush1.msra.mxu0 0.0
    %386 = vmatprep.subr.mxu0 0.0
    %387 = vmatpush1.msra.mxu0 0.0
    %388 = vmatprep.subr.mxu0 0.0
    %389 = vmatpush1.msra.mxu0 0.0
    %390 = vmatprep.subr.mxu0 0.0
    %391 = vmatpush1.msra.mxu0 0.0
    %392 = vmatprep.subr.mxu0 0.0
    %393 = vmatpush1.msra.mxu0 0.0
    %394 = vmatprep.subr.mxu0 0.0
    %395 = vmatpush1.msra.mxu0 0.0
    %396 = vmatprep.subr.mxu0 0.0
    %397 = vmatpush1.msra.mxu0 0.0
    %398 = vmatprep.subr.mxu0 0.0
    %399 = vmatpush1.msra.mxu0 0.0
    %400 = vmatprep.subr.mxu0 0.0
    %401 = vmatpush1.msra.mxu0 0.0
    %402 = vmatprep.subr.mxu0 0.0
    %403 = vmatpush1.msra.mxu0 0.0
    %404 = vmatprep.subr.mxu0 0.0
    %405 = vmatpush1.msra.mxu0 0.0
    %406 = vmatprep.subr.mxu0 0.0
    %407 = vmatpush1.msra.mxu0 0.0
    %408 = vmatprep.subr.mxu0 0.0
    %409 = vmatpush1.msra.mxu0 0.0
    %410 = vmatprep.subr.mxu0 0.0
    %411 = vmatpush1.msra.mxu0 0.0
    %412 = vmatprep.subr.mxu0 0.0
    %413 = vmatpush1.msra.mxu0 0.0
    %414 = vmatprep.subr.mxu0 0.0
    %415 = vmatpush1.msra.mxu0 0.0
    %416 = vmatprep.subr.mxu0 0.0
    %417 = vmatpush1.msra.mxu0 0.0
    %418 = vmatprep.subr.mxu0 0.0
    %419 = vmatpush1.msra.mxu0 0.0
    %420 = vmatprep.subr.mxu0 0.0
    %421 = vmatpush1.msra.mxu0 0.0
    %422 = vmatprep.subr.mxu0 0.0
    %423 = vmatpush1.msra.mxu0 0.0
    %424 = vmatprep.subr.mxu0 0.0
    %425 = vmatpush1.msra.mxu0 0.0
    %426 = vmatprep.subr.mxu0 0.0
    %427 = vmatpush1.msra.mxu0 0.0
    %428 = vmatprep.subr.mxu0 0.0
    %429 = vmatpush1.msra.mxu0 0.0
    %430 = vmatprep.subr.mxu0 0.0
    %431 = vmatpush1.msra.mxu0 0.0
    %432 = vmatprep.subr.mxu0 0.0
    %433 = vmatpush1.msra.mxu0 0.0
    %434 = vmatprep.subr.mxu0 0.0
    %435 = vmatpush1.msra.mxu0 0.0
    %436 = vmatprep.subr.mxu0 0.0
    %437 = vmatpush1.msra.mxu0 0.0
    %438 = vmatprep.mubr.f32.mxu0 0.0
    %439 = vmatmul.mubr.f32.gmra.mrb[0].mxu0 %v369
    %v440 = vpop.f32.mrb[0].mxu0
    %v441 = vadd.f32 0.0, %v440
    %v442 = vpop.f32.mrb[0].mxu0
    %443 = vmatprep.mubr.f32.mxu0 0.0
    %444 = vmatmul.mubr.f32.gmra.mrb[0].mxu0 %v372
    %v445 = vpop.f32.mrb[0].mxu0
    %v446 = vadd.f32 0.0, %v445
    %v447 = vpop.f32.mrb[0].mxu0
    %448 = vdwg.mxu0
    %v450 = vsel %vm205, %v441, 0
    %v453 = vsel %vm205, %v446, 0
    %455 = vmatprep.subr.mxu0 0.0
    %456 = vmatpush1.msra.mxu0 %v40
    %457 = vmatprep.subr.mxu0 0.0
    %458 = vmatpush1.msra.mxu0 %v41
    %459 = vmatprep.subr.mxu0 0.0
    %460 = vmatpush1.msra.mxu0 %v42
    %461 = vmatprep.subr.mxu0 0.0
    %462 = vmatpush1.msra.mxu0 %v43
    %463 = vmatprep.subr.mxu0 0.0
    %464 = vmatpush1.msra.mxu0 0.0
    %465 = vmatprep.subr.mxu0 0.0
    %466 = vmatpush1.msra.mxu0 0.0
    %467 = vmatprep.subr.mxu0 0.0
    %468 = vmatpush1.msra.mxu0 0.0
    %469 = vmatprep.subr.mxu0 0.0
    %470 = vmatpush1.msra.mxu0 0.0
    %471 = vmatprep.subr.mxu0 0.0
    %472 = vmatpush1.msra.mxu0 0.0
    %473 = vmatprep.subr.mxu0 0.0
    %474 = vmatpush1.msra.mxu0 0.0
    %475 = vmatprep.subr.mxu0 0.0
    %476 = vmatpush1.msra.mxu0 0.0
    %477 = vmatprep.subr.mxu0 0.0
    %478 = vmatpush1.msra.mxu0 0.0
    %479 = vmatprep.subr.mxu0 0.0
    %480 = vmatpush1.msra.mxu0 0.0
    %481 = vmatprep.subr.mxu0 0.0
    %482 = vmatpush1.msra.mxu0 0.0
    %483 = vmatprep.subr.mxu0 0.0
    %484 = vmatpush1.msra.mxu0 0.0
    %485 = vmatprep.subr.mxu0 0.0
    %486 = vmatpush1.msra.mxu0 0.0
    %487 = vmatprep.subr.mxu0 0.0
    %488 = vmatpush1.msra.mxu0 0.0
    %489 = vmatprep.subr.mxu0 0.0
    %490 = vmatpush1.msra.mxu0 0.0
    %491 = vmatprep.subr.mxu0 0.0
    %492 = vmatpush1.msra.mxu0 0.0
    %493 = vmatprep.subr.mxu0 0.0
    %494 = vmatpush1.msra.mxu0 0.0
    %495 = vmatprep.subr.mxu0 0.0
    %496 = vmatpush1.msra.mxu0 0.0
    %497 = vmatprep.subr.mxu0 0.0
    %498 = vmatpush1.msra.mxu0 0.0
    %499 = vmatprep.subr.mxu0 0.0
    %500 = vmatpush1.msra.mxu0 0.0
    %501 = vmatprep.subr.mxu0 0.0
    %502 = vmatpush1.msra.mxu0 0.0
    %503 = vmatprep.subr.mxu0 0.0
    %504 = vmatpush1.msra.mxu0 0.0
    %505 = vmatprep.subr.mxu0 0.0
    %506 = vmatpush1.msra.mxu0 0.0
    %507 = vmatprep.subr.mxu0 0.0
    %508 = vmatpush1.msra.mxu0 0.0
    %509 = vmatprep.subr.mxu0 0.0
    %510 = vmatpush1.msra.mxu0 0.0
    %511 = vmatprep.subr.mxu0 0.0
    %512 = vmatpush1.msra.mxu0 0.0
    %513 = vmatprep.subr.mxu0 0.0
    %514 = vmatpush1.msra.mxu0 0.0
    %515 = vmatprep.subr.mxu0 0.0
    %516 = vmatpush1.msra.mxu0 0.0
    %517 = vmatprep.subr.mxu0 0.0
    %518 = vmatpush1.msra.mxu0 0.0
    %519 = vmatprep.mubr.f32.mxu0 0.0
    %520 = vmatmul.mubr.f32.gmra.mrb[0].mxu0 %v450
    %v521 = vpop.f32.mrb[0].mxu0
    %v522 = vadd.f32 0.0, %v521
    %v523 = vpop.f32.mrb[0].mxu0
    %524 = vmatprep.mubr.f32.mxu0 0.0
    %525 = vmatmul.mubr.f32.gmra.mrb[0].mxu0 %v453
    %v526 = vpop.f32.mrb[0].mxu0
    %v527 = vadd.f32 0.0, %v526
    %v528 = vpop.f32.mrb[0].mxu0
    %529 = vdwg.mxu0
    %v530 = vadd.f32 %v360, %v522
    %v531 = vadd.f32 %v365, %v527
    %v532 = vlaneseq
    %v533 = vshrl.u32 %v532, 7
    %v534 = vsub.s32 0, %v533
    %v535 = vrot.slane %v56, %v534
    %v536 = vadd.f32 %v530, %v535
    %v537 = vadd.f32 %v531, %v535
    %v538 = vmax.f32 %v536, 0.0
    %v539 = vmax.f32 %v537, 0.0
    %v540 = vsel %vm205, %v538, 0.0
    %541 = vadd.xlane.f32.xlu0 %v540
    %v542 = vpop.xlane.xlu0 %541
    %v543 = vsel %vm205, %v539, 0.0
    %544 = vadd.xlane.f32.xlu0 %v543
    %v545 = vpop.xlane.xlu0 %544
    %v546 = vrcp.pop 32.0
    %v547 = vmul.f32 %v542, %v546
    %v548 = vmul.f32 %v545, %v546
    %v549 = vsub.f32 %v538, %v547
    %v550 = vsub.f32 %v539, %v548
    %v551 = vmul.f32 %v549, %v549
    %v552 = vmul.f32 %v550, %v550
    %v553 = vsel %vm205, %v551, 0.0
    %554 = vadd.xlane.f32.xlu0 %v553
    %v555 = vpop.xlane.xlu0 %554
    %v556 = vsel %vm205, %v552, 0.0
    %557 = vadd.xlane.f32.xlu0 %v556
    %v558 = vpop.xlane.xlu0 %557
    %v559 = vmul.f32 %v555, %v546
    %v560 = vmul.f32 %v558, %v546
    %v561 = vadd.f32 %v559, 1e-05
    %v562 = vadd.f32 %v560, 1e-05
    %v563 = vrsqrt.pop %v561
    %v564 = vrsqrt.pop %v562
    %v565 = vmul.f32 %v549, %v563
    %v566 = vmul.f32 %v550, %v564
    %v567 = vlaneseq
    %v568 = vshrl.u32 %v567, 7
    %v569 = vsub.s32 1, %v568
    %v570 = vrot.slane %v56, %v569
    %v571 = vmul.f32 %v565, %v570
    %v572 = vmul.f32 %v566, %v570
    %v573 = vlaneseq
    %v574 = vshrl.u32 %v573, 7
    %v575 = vsub.s32 2, %v574
    %v576 = vrot.slane %v56, %v575
    %v577 = vadd.f32 %v571, %v576
    %v578 = vadd.f32 %v572, %v576
    %579 = vmatprep.subr.mxu0 0.0
    %580 = vmatpush1.msra.mxu0 %v577
    %581 = vmatprep.subr.mxu0 0.0
    %582 = vmatpush1.msra.mxu0 %v578
    %583 = vmatprep.subr.mxu0 0.0
    %584 = vmatpush1.msra.mxu0 0.0
    %585 = vmatprep.subr.mxu0 0.0
    %586 = vmatpush1.msra.mxu0 0.0
    %587 = vmatprep.subr.mxu0 0.0
    %588 = vmatpush1.msra.mxu0 0.0
    %589 = vmatprep.subr.mxu0 0.0
    %590 = vmatpush1.msra.mxu0 0.0
    %591 = vmatprep.subr.mxu0 0.0
    %592 = vmatpush1.msra.mxu0 0.0
    %593 = vmatprep.subr.mxu0 0.0
    %594 = vmatpush1.msra.mxu0 0.0
    %595 = vmatprep.subr.mxu0 0.0
    %596 = vmatpush1.msra.mxu0 0.0
    %597 = vmatprep.subr.mxu0 0.0
    %598 = vmatpush1.msra.mxu0 0.0
    %599 = vmatprep.subr.mxu0 0.0
    %600 = vmatpush1.msra.mxu0 0.0
    %601 = vmatprep.subr.mxu0 0.0
    %602 = vmatpush1.msra.mxu0 0.0
    %603 = vmatprep.subr.mxu0 0.0
    %604 = vmatpush1.msra.mxu0 0.0
    %605 = vmatprep.subr.mxu0 0.0
    %606 = vmatpush1.msra.mxu0 0.0
    %607 = vmatprep.subr.mxu0 0.0
    %608 = vmatpush1.msra.mxu0 0.0
    %609 = vmatprep.subr.mxu0 0.0
    %610 = vmatpush1.msra.mxu0 0.0
    %611 = vmatprep.subr.mxu0 0.0
    %612 = vmatpush1.msra.mxu0 0.0
    %613 = vmatprep.subr.mxu0 0.0
    %614 = vmatpush1.msra.mxu0 0.0
    %615 = vmatprep.subr.mxu0 0.0
    %616 = vmatpush1.msra.mxu0 0.0
    %617 = vmatprep.subr.mxu0 0.0
    %618 = vmatpush1.msra.mxu0 0.0
    %619 = vmatprep.subr.mxu0 0.0
    %620 = vmatpush1.msra.mxu0 0.0
    %621 = vmatprep.subr.mxu0 0.0
    %622 = vmatpush1.msra.mxu0 0.0
    %623 = vmatprep.subr.mxu0 0.0
    %624 = vmatpush1.msra.mxu0 0.0
    %625 = vmatprep.subr.mxu0 0.0
    %626 = vmatpush1.msra.mxu0 0.0
    %627 = vmatprep.subr.mxu0 0.0
    %628 = vmatpush1.msra.mxu0 0.0
    %629 = vmatprep.subr.mxu0 0.0
    %630 = vmatpush1.msra.mxu0 0.0
    %631 = vmatprep.subr.mxu0 0.0
    %632 = vmatpush1.msra.mxu0 0.0
    %633 = vmatprep.subr.mxu0 0.0
    %634 = vmatpush1.msra.mxu0 0.0
    %635 = vmatprep.subr.mxu0 0.0
    %636 = vmatpush1.msra.mxu0 0.0
    %637 = vmatprep.subr.mxu0 0.0
    %638 = vmatpush1.msra.mxu0 0.0
    %639 = vmatprep.subr.mxu0 0.0
    %640 = vmatpush1.msra.mxu0 0.0
    %641 = vmatprep.subr.mxu0 0.0
    %642 = vmatpush1.msra.mxu0 0.0
    %643 = vmatprep.mubr.f32.mxu0 0.0
    %644 = vmatmul.mubr.f32.gmra.mrb[0].mxu0 %v125
    %v645 = vpop.f32.mrb[0].mxu0
    %v646 = vadd.f32 0.0, %v645
    %v647 = vpop.f32.mrb[0].mxu0
    %648 = vmatprep.mubr.f32.mxu0 0.0
    %649 = vmatmul.mubr.f32.gmra.mrb[0].mxu0 %v128
    %v650 = vpop.f32.mrb[0].mxu0
    %v651 = vadd.f32 0.0, %v650
    %v652 = vpop.f32.mrb[0].mxu0
    %653 = vdwg.mxu0
    %v655 = vsel %vm205, %v577, 0
    %v658 = vsel %vm205, %v578, 0
    %660 = vmatprep.subr.mxu0 0.0
    %661 = vmatpush1.msra.mxu0 %v48
    %662 = vmatprep.subr.mxu0 0.0
    %663 = vmatpush1.msra.mxu0 %v49
    %664 = vmatprep.subr.mxu0 0.0
    %665 = vmatpush1.msra.mxu0 %v50
    %666 = vmatprep.subr.mxu0 0.0
    %667 = vmatpush1.msra.mxu0 %v51
    %668 = vmatprep.subr.mxu0 0.0
    %669 = vmatpush1.msra.mxu0 0.0
    %670 = vmatprep.subr.mxu0 0.0
    %671 = vmatpush1.msra.mxu0 0.0
    %672 = vmatprep.subr.mxu0 0.0
    %673 = vmatpush1.msra.mxu0 0.0
    %674 = vmatprep.subr.mxu0 0.0
    %675 = vmatpush1.msra.mxu0 0.0
    %676 = vmatprep.subr.mxu0 0.0
    %677 = vmatpush1.msra.mxu0 0.0
    %678 = vmatprep.subr.mxu0 0.0
    %679 = vmatpush1.msra.mxu0 0.0
    %680 = vmatprep.subr.mxu0 0.0
    %681 = vmatpush1.msra.mxu0 0.0
    %682 = vmatprep.subr.mxu0 0.0
    %683 = vmatpush1.msra.mxu0 0.0
    %684 = vmatprep.subr.mxu0 0.0
    %685 = vmatpush1.msra.mxu0 0.0
    %686 = vmatprep.subr.mxu0 0.0
    %687 = vmatpush1.msra.mxu0 0.0
    %688 = vmatprep.subr.mxu0 0.0
    %689 = vmatpush1.msra.mxu0 0.0
    %690 = vmatprep.subr.mxu0 0.0
    %691 = vmatpush1.msra.mxu0 0.0
    %692 = vmatprep.subr.mxu0 0.0
    %693 = vmatpush1.msra.mxu0 0.0
    %694 = vmatprep.subr.mxu0 0.0
    %695 = vmatpush1.msra.mxu0 0.0
    %696 = vmatprep.subr.mxu0 0.0
    %697 = vmatpush1.msra.mxu0 0.0
    %698 = vmatprep.subr.mxu0 0.0
    %699 = vmatpush1.msra.mxu0 0.0
    %700 = vmatprep.subr.mxu0 0.0
    %701 = vmatpush1.msra.mxu0 0.0
    %702 = vmatprep.subr.mxu0 0.0
    %703 = vmatpush1.msra.mxu0 0.0
    %704 = vmatprep.subr.mxu0 0.0
    %705 = vmatpush1.msra.mxu0 0.0
    %706 = vmatprep.subr.mxu0 0.0
    %707 = vmatpush1.msra.mxu0 0.0
    %708 = vmatprep.subr.mxu0 0.0
    %709 = vmatpush1.msra.mxu0 0.0
    %710 = vmatprep.subr.mxu0 0.0
    %711 = vmatpush1.msra.mxu0 0.0
    %712 = vmatprep.subr.mxu0 0.0
    %713 = vmatpush1.msra.mxu0 0.0
    %714 = vmatprep.subr.mxu0 0.0
    %715 = vmatpush1.msra.mxu0 0.0
    %716 = vmatprep.subr.mxu0 0.0
    %717 = vmatpush1.msra.mxu0 0.0
    %718 = vmatprep.subr.mxu0 0.0
    %719 = vmatpush1.msra.mxu0 0.0
    %720 = vmatprep.subr.mxu0 0.0
    %721 = vmatpush1.msra.mxu0 0.0
    %722 = vmatprep.subr.mxu0 0.0
    %723 = vmatpush1.msra.mxu0 0.0
    %724 = vmatprep.mubr.f32.mxu0 0.0
    %725 = vmatmul.mubr.f32.gmra.mrb[0].mxu0 %v655
    %v726 = vpop.f32.mrb[0].mxu0
    %v727 = vadd.f32 0.0, %v726
    %v728 = vpop.f32.mrb[0].mxu0
    %729 = vmatprep.mubr.f32.mxu0 0.0
    %730 = vmatmul.mubr.f32.gmra.mrb[0].mxu0 %v658
    %v731 = vpop.f32.mrb[0].mxu0
    %v732 = vadd.f32 0.0, %v731
    %v733 = vpop.f32.mrb[0].mxu0
    %734 = vdwg.mxu0
    %v736 = vsel %vm205, %v646, 0
    %v739 = vsel %vm205, %v651, 0
    %741 = vmatprep.subr.mxu0 0.0
    %742 = vmatpush1.msra.mxu0 %v44
    %743 = vmatprep.subr.mxu0 0.0
    %744 = vmatpush1.msra.mxu0 %v45
    %745 = vmatprep.subr.mxu0 0.0
    %746 = vmatpush1.msra.mxu0 %v46
    %747 = vmatprep.subr.mxu0 0.0
    %748 = vmatpush1.msra.mxu0 %v47
    %749 = vmatprep.subr.mxu0 0.0
    %750 = vmatpush1.msra.mxu0 0.0
    %751 = vmatprep.subr.mxu0 0.0
    %752 = vmatpush1.msra.mxu0 0.0
    %753 = vmatprep.subr.mxu0 0.0
    %754 = vmatpush1.msra.mxu0 0.0
    %755 = vmatprep.subr.mxu0 0.0
    %756 = vmatpush1.msra.mxu0 0.0
    %757 = vmatprep.subr.mxu0 0.0
    %758 = vmatpush1.msra.mxu0 0.0
    %759 = vmatprep.subr.mxu0 0.0
    %760 = vmatpush1.msra.mxu0 0.0
    %761 = vmatprep.subr.mxu0 0.0
    %762 = vmatpush1.msra.mxu0 0.0
    %763 = vmatprep.subr.mxu0 0.0
    %764 = vmatpush1.msra.mxu0 0.0
    %765 = vmatprep.subr.mxu0 0.0
    %766 = vmatpush1.msra.mxu0 0.0
    %767 = vmatprep.subr.mxu0 0.0
    %768 = vmatpush1.msra.mxu0 0.0
    %769 = vmatprep.subr.mxu0 0.0
    %770 = vmatpush1.msra.mxu0 0.0
    %771 = vmatprep.subr.mxu0 0.0
    %772 = vmatpush1.msra.mxu0 0.0
    %773 = vmatprep.subr.mxu0 0.0
    %774 = vmatpush1.msra.mxu0 0.0
    %775 = vmatprep.subr.mxu0 0.0
    %776 = vmatpush1.msra.mxu0 0.0
    %777 = vmatprep.subr.mxu0 0.0
    %778 = vmatpush1.msra.mxu0 0.0
    %779 = vmatprep.subr.mxu0 0.0
    %780 = vmatpush1.msra.mxu0 0.0
    %781 = vmatprep.subr.mxu0 0.0
    %782 = vmatpush1.msra.mxu0 0.0
    %783 = vmatprep.subr.mxu0 0.0
    %784 = vmatpush1.msra.mxu0 0.0
    %785 = vmatprep.subr.mxu0 0.0
    %786 = vmatpush1.msra.mxu0 0.0
    %787 = vmatprep.subr.mxu0 0.0
    %788 = vmatpush1.msra.mxu0 0.0
    %789 = vmatprep.subr.mxu0 0.0
    %790 = vmatpush1.msra.mxu0 0.0
    %791 = vmatprep.subr.mxu0 0.0
    %792 = vmatpush1.msra.mxu0 0.0
    %793 = vmatprep.subr.mxu0 0.0
    %794 = vmatpush1.msra.mxu0 0.0
    %795 = vmatprep.subr.mxu0 0.0
    %796 = vmatpush1.msra.mxu0 0.0
    %797 = vmatprep.subr.mxu0 0.0
    %798 = vmatpush1.msra.mxu0 0.0
    %799 = vmatprep.subr.mxu0 0.0
    %800 = vmatpush1.msra.mxu0 0.0
    %801 = vmatprep.subr.mxu0 0.0
    %802 = vmatpush1.msra.mxu0 0.0
    %803 = vmatprep.subr.mxu0 0.0
    %804 = vmatpush1.msra.mxu0 0.0
    %805 = vmatprep.mubr.f32.mxu0 0.0
    %806 = vmatmul.mubr.f32.gmra.mrb[0].mxu0 %v736
    %v807 = vpop.f32.mrb[0].mxu0
    %v808 = vadd.f32 %v727, %v807
    %v809 = vpop.f32.mrb[0].mxu0
    %810 = vmatprep.mubr.f32.mxu0 0.0
    %811 = vmatmul.mubr.f32.gmra.mrb[0].mxu0 %v739
    %v812 = vpop.f32.mrb[0].mxu0
    %v813 = vadd.f32 %v732, %v812
    %v814 = vpop.f32.mrb[0].mxu0
    %815 = vdwg.mxu0
    %816 = vmatprep.subr.mxu0 0.0
    %817 = vmatpush1.msra.mxu0 %v577
    %818 = vmatprep.subr.mxu0 0.0
    %819 = vmatpush1.msra.mxu0 %v578
    %820 = vmatprep.subr.mxu0 0.0
    %821 = vmatpush1.msra.mxu0 0.0
    %822 = vmatprep.subr.mxu0 0.0
    %823 = vmatpush1.msra.mxu0 0.0
    %824 = vmatprep.subr.mxu0 0.0
    %825 = vmatpush1.msra.mxu0 0.0
    %826 = vmatprep.subr.mxu0 0.0
    %827 = vmatpush1.msra.mxu0 0.0
    %828 = vmatprep.subr.mxu0 0.0
    %829 = vmatpush1.msra.mxu0 0.0
    %830 = vmatprep.subr.mxu0 0.0
    %831 = vmatpush1.msra.mxu0 0.0
    %832 = vmatprep.subr.mxu0 0.0
    %833 = vmatpush1.msra.mxu0 0.0
    %834 = vmatprep.subr.mxu0 0.0
    %835 = vmatpush1.msra.mxu0 0.0
    %836 = vmatprep.subr.mxu0 0.0
    %837 = vmatpush1.msra.mxu0 0.0
    %838 = vmatprep.subr.mxu0 0.0
    %839 = vmatpush1.msra.mxu0 0.0
    %840 = vmatprep.subr.mxu0 0.0
    %841 = vmatpush1.msra.mxu0 0.0
    %842 = vmatprep.subr.mxu0 0.0
    %843 = vmatpush1.msra.mxu0 0.0
    %844 = vmatprep.subr.mxu0 0.0
    %845 = vmatpush1.msra.mxu0 0.0
    %846 = vmatprep.subr.mxu0 0.0
    %847 = vmatpush1.msra.mxu0 0.0
    %848 = vmatprep.subr.mxu0 0.0
    %849 = vmatpush1.msra.mxu0 0.0
    %850 = vmatprep.subr.mxu0 0.0
    %851 = vmatpush1.msra.mxu0 0.0
    %852 = vmatprep.subr.mxu0 0.0
    %853 = vmatpush1.msra.mxu0 0.0
    %854 = vmatprep.subr.mxu0 0.0
    %855 = vmatpush1.msra.mxu0 0.0
    %856 = vmatprep.subr.mxu0 0.0
    %857 = vmatpush1.msra.mxu0 0.0
    %858 = vmatprep.subr.mxu0 0.0
    %859 = vmatpush1.msra.mxu0 0.0
    %860 = vmatprep.subr.mxu0 0.0
    %861 = vmatpush1.msra.mxu0 0.0
    %862 = vmatprep.subr.mxu0 0.0
    %863 = vmatpush1.msra.mxu0 0.0
    %864 = vmatprep.subr.mxu0 0.0
    %865 = vmatpush1.msra.mxu0 0.0
    %866 = vmatprep.subr.mxu0 0.0
    %867 = vmatpush1.msra.mxu0 0.0
    %868 = vmatprep.subr.mxu0 0.0
    %869 = vmatpush1.msra.mxu0 0.0
    %870 = vmatprep.subr.mxu0 0.0
    %871 = vmatpush1.msra.mxu0 0.0
    %872 = vmatprep.subr.mxu0 0.0
    %873 = vmatpush1.msra.mxu0 0.0
    %874 = vmatprep.subr.mxu0 0.0
    %875 = vmatpush1.msra.mxu0 0.0
    %876 = vmatprep.subr.mxu0 0.0
    %877 = vmatpush1.msra.mxu0 0.0
    %878 = vmatprep.subr.mxu0 0.0
    %879 = vmatpush1.msra.mxu0 0.0
    %880 = vmatprep.mubr.f32.mxu0 0.0
    %881 = vmatmul.mubr.f32.gmra.mrb[0].mxu0 %v369
    %v882 = vpop.f32.mrb[0].mxu0
    %v883 = vadd.f32 0.0, %v882
    %v884 = vpop.f32.mrb[0].mxu0
    %885 = vmatprep.mubr.f32.mxu0 0.0
    %886 = vmatmul.mubr.f32.gmra.mrb[0].mxu0 %v372
    %v887 = vpop.f32.mrb[0].mxu0
    %v888 = vadd.f32 0.0, %v887
    %v889 = vpop.f32.mrb[0].mxu0
    %890 = vdwg.mxu0
    %v892 = vsel %vm205, %v883, 0
    %v895 = vsel %vm205, %v888, 0
    %897 = vmatprep.subr.mxu0 0.0
    %898 = vmatpush1.msra.mxu0 %v52
    %899 = vmatprep.subr.mxu0 0.0
    %900 = vmatpush1.msra.mxu0 %v53
    %901 = vmatprep.subr.mxu0 0.0
    %902 = vmatpush1.msra.mxu0 %v54
    %903 = vmatprep.subr.mxu0 0.0
    %904 = vmatpush1.msra.mxu0 %v55
    %905 = vmatprep.subr.mxu0 0.0
    %906 = vmatpush1.msra.mxu0 0.0
    %907 = vmatprep.subr.mxu0 0.0
    %908 = vmatpush1.msra.mxu0 0.0
    %909 = vmatprep.subr.mxu0 0.0
    %910 = vmatpush1.msra.mxu0 0.0
    %911 = vmatprep.subr.mxu0 0.0
    %912 = vmatpush1.msra.mxu0 0.0
    %913 = vmatprep.subr.mxu0 0.0
    %914 = vmatpush1.msra.mxu0 0.0
    %915 = vmatprep.subr.mxu0 0.0
    %916 = vmatpush1.msra.mxu0 0.0
    %917 = vmatprep.subr.mxu0 0.0
    %918 = vmatpush1.msra.mxu0 0.0
    %919 = vmatprep.subr.mxu0 0.0
    %920 = vmatpush1.msra.mxu0 0.0
    %921 = vmatprep.subr.mxu0 0.0
    %922 = vmatpush1.msra.mxu0 0.0
    %923 = vmatprep.subr.mxu0 0.0
    %924 = vmatpush1.msra.mxu0 0.0
    %925 = vmatprep.subr.mxu0 0.0
    %926 = vmatpush1.msra.mxu0 0.0
    %927 = vmatprep.subr.mxu0 0.0
    %928 = vmatpush1.msra.mxu0 0.0
    %929 = vmatprep.subr.mxu0 0.0
    %930 = vmatpush1.msra.mxu0 0.0
    %931 = vmatprep.subr.mxu0 0.0
    %932 = vmatpush1.msra.mxu0 0.0
    %933 = vmatprep.subr.mxu0 0.0
    %934 = vmatpush1.msra.mxu0 0.0
    %935 = vmatprep.subr.mxu0 0.0
    %936 = vmatpush1.msra.mxu0 0.0
    %937 = vmatprep.subr.mxu0 0.0
    %938 = vmatpush1.msra.mxu0 0.0
    %939 = vmatprep.subr.mxu0 0.0
    %940 = vmatpush1.msra.mxu0 0.0
    %941 = vmatprep.subr.mxu0 0.0
    %942 = vmatpush1.msra.mxu0 0.0
    %943 = vmatprep.subr.mxu0 0.0
    %944 = vmatpush1.msra.mxu0 0.0
    %945 = vmatprep.subr.mxu0 0.0
    %946 = vmatpush1.msra.mxu0 0.0
    %947 = vmatprep.subr.mxu0 0.0
    %948 = vmatpush1.msra.mxu0 0.0
    %949 = vmatprep.subr.mxu0 0.0
    %950 = vmatpush1.msra.mxu0 0.0
    %951 = vmatprep.subr.mxu0 0.0
    %952 = vmatpush1.msra.mxu0 0.0
    %953 = vmatprep.subr.mxu0 0.0
    %954 = vmatpush1.msra.mxu0 0.0
    %955 = vmatprep.subr.mxu0 0.0
    %956 = vmatpush1.msra.mxu0 0.0
    %957 = vmatprep.subr.mxu0 0.0
    %958 = vmatpush1.msra.mxu0 0.0
    %959 = vmatprep.subr.mxu0 0.0
    %960 = vmatpush1.msra.mxu0 0.0
    %961 = vmatprep.mubr.f32.mxu0 0.0
    %962 = vmatmul.mubr.f32.gmra.mrb[0].mxu0 %v892
    %v963 = vpop.f32.mrb[0].mxu0
    %v964 = vadd.f32 0.0, %v963
    %v965 = vpop.f32.mrb[0].mxu0
    %966 = vmatprep.mubr.f32.mxu0 0.0
    %967 = vmatmul.mubr.f32.gmra.mrb[0].mxu0 %v895
    %v968 = vpop.f32.mrb[0].mxu0
    %v969 = vadd.f32 0.0, %v968
    %v970 = vpop.f32.mrb[0].mxu0
    %971 = vdwg.mxu0
    %v972 = vadd.f32 %v808, %v964
    %v973 = vadd.f32 %v813, %v969
    %v974 = vlaneseq
    %v975 = vshrl.u32 %v974, 7
    %v976 = vsub.s32 3, %v975
    %v977 = vrot.slane %v56, %v976
    %v978 = vadd.f32 %v972, %v977
    %v979 = vadd.f32 %v973, %v977
    %v980 = vmax.f32 %v978, 0.0
    %v981 = vmax.f32 %v979, 0.0
    %v982 = vsel %vm205, %v980, 0.0
    %983 = vadd.xlane.f32.xlu0 %v982
    %v984 = vpop.xlane.xlu0 %983
    %v985 = vsel %vm205, %v981, 0.0
    %986 = vadd.xlane.f32.xlu0 %v985
    %v987 = vpop.xlane.xlu0 %986
    %v988 = vmul.f32 %v984, %v546
    %v989 = vmul.f32 %v987, %v546
    %v990 = vsub.f32 %v980, %v988
    %v991 = vsub.f32 %v981, %v989
    %v992 = vmul.f32 %v990, %v990
    %v993 = vmul.f32 %v991, %v991
    %v994 = vsel %vm205, %v992, 0.0
    %995 = vadd.xlane.f32.xlu0 %v994
    %v996 = vpop.xlane.xlu0 %995
    %v997 = vsel %vm205, %v993, 0.0
    %998 = vadd.xlane.f32.xlu0 %v997
    %v999 = vpop.xlane.xlu0 %998
    %v1000 = vmul.f32 %v996, %v546
    %v1001 = vmul.f32 %v999, %v546
    %v1002 = vadd.f32 %v1000, 1e-05
    %v1003 = vadd.f32 %v1001, 1e-05
    %v1004 = vrsqrt.pop %v1002
    %v1005 = vrsqrt.pop %v1003
    %v1006 = vmul.f32 %v990, %v1004
    %v1007 = vmul.f32 %v991, %v1005
    %v1008 = vlaneseq
    %v1009 = vshrl.u32 %v1008, 7
    %v1010 = vsub.s32 4, %v1009
    %v1011 = vrot.slane %v56, %v1010
    %v1012 = vmul.f32 %v1006, %v1011
    %v1013 = vmul.f32 %v1007, %v1011
    %v1014 = vlaneseq
    %v1015 = vshrl.u32 %v1014, 7
    %v1016 = vsub.s32 5, %v1015
    %v1017 = vrot.slane %v56, %v1016
    %v1018 = vadd.f32 %v1012, %v1017
    %v1019 = vadd.f32 %v1013, %v1017
    %v1020 = vlaneseq
    %v1021 = vshrl.u32 %v1020, 7
    %v1022 = vsub.s32 6, %v1021
    %v1023 = vrot.slane %v56, %v1022
    %v1024 = vmul.f32 %v1018, %v1023
    %v1025 = vmul.f32 %v1019, %v1023
    %v1026 = vsel %vm205, %v1024, 0.0
    %1027 = vadd.xlane.f32.xlu0 %v1026
    %v1028 = vpop.xlane.xlu0 %1027
    %v1029 = vsel %vm205, %v1025, 0.0
    %1030 = vadd.xlane.f32.xlu0 %v1029
    %v1031 = vpop.xlane.xlu0 %1030
    %v1032 = vstv %s29
    %v1033 = vadd.f32 %v1028, %v1032
    %v1034 = vadd.f32 %v1031, %v1032
    %v1035 = vsub.f32 %v1033, -1.0
    %v1036 = vsub.f32 %v1034, -1.0
    %v1037 = vrcp.pop 2.0
    %v1038 = vmul.f32 %v1035, %v1037
    %v1039 = vmul.f32 %v1036, %v1037
    %v1040 = vmul.f32 %v1038, 7.0
    %v1041 = vmul.f32 %v1039, 7.0
    %v1042 = vstv %s28
    %v1043 = vmul.f32 %v1040, %v1042
    %v1044 = vmul.f32 %v1041, %v1042
    %v1045 = vadd.f32 %v1043, 0.5
    %v1046 = vadd.f32 %v1044, 0.5
    %v1047 = vcvt.f32.s32.to.zero.pseudo %v1045
    %v1048 = vcvt.f32.s32.to.zero.pseudo %v1046
    %vm1049 = vcmp.gt.s32.totalorder %v1047, 0
    %v1050 = vsel %vm1049, %v1047, 0
    %vm1051 = vcmp.gt.s32.totalorder %v1048, 0
    %v1052 = vsel %vm1051, %v1048, 0
    %vm1053 = vcmp.lt.s32.totalorder %v1050, 7
    %v1054 = vsel %vm1053, %v1050, 7
    %vm1055 = vcmp.lt.s32.totalorder %v1052, 7
    %v1056 = vsel %vm1055, %v1052, 7
    %vm1057 = vcmp.eq.s32.totalorder %v62, %v1054
    %vm1058 = vcmp.eq.s32.totalorder %v62, %v1056
    %v1059 = vsel %vm1057, 1, 0
    %v1060 = vsel %vm1058, 1, 0
    %v1061 = vcvt.s32.f32 %v1059
    %v1062 = vcvt.s32.f32 %v1060
    %vm1063 = vcmask 64512
    %v1065 = vsel %vm1063, %v1061, 0
    %v1068 = vsel %vm1063, %v1062, 0
    %1070 = vmatprep.subr.mxu0 0.0
    %1071 = vmatpush1.msra.mxu0 %v57
    %1072 = vmatprep.subr.mxu0 0.0
    %1073 = vmatpush1.msra.mxu0 0.0
    %1074 = vmatprep.subr.mxu0 0.0
    %1075 = vmatpush1.msra.mxu0 0.0
    %1076 = vmatprep.subr.mxu0 0.0
    %1077 = vmatpush1.msra.mxu0 0.0
    %1078 = vmatprep.subr.mxu0 0.0
    %1079 = vmatpush1.msra.mxu0 0.0
    %1080 = vmatprep.subr.mxu0 0.0
    %1081 = vmatpush1.msra.mxu0 0.0
    %1082 = vmatprep.subr.mxu0 0.0
    %1083 = vmatpush1.msra.mxu0 0.0
    %1084 = vmatprep.subr.mxu0 0.0
    %1085 = vmatpush1.msra.mxu0 0.0
    %1086 = vmatprep.subr.mxu0 0.0
    %1087 = vmatpush1.msra.mxu0 0.0
    %1088 = vmatprep.subr.mxu0 0.0
    %1089 = vmatpush1.msra.mxu0 0.0
    %1090 = vmatprep.subr.mxu0 0.0
    %1091 = vmatpush1.msra.mxu0 0.0
    %1092 = vmatprep.subr.mxu0 0.0
    %1093 = vmatpush1.msra.mxu0 0.0
    %1094 = vmatprep.subr.mxu0 0.0
    %1095 = vmatpush1.msra.mxu0 0.0
    %1096 = vmatprep.subr.mxu0 0.0
    %1097 = vmatpush1.msra.mxu0 0.0
    %1098 = vmatprep.subr.mxu0 0.0
    %1099 = vmatpush1.msra.mxu0 0.0
    %1100 = vmatprep.subr.mxu0 0.0
    %1101 = vmatpush1.msra.mxu0 0.0
    %1102 = vmatprep.subr.mxu0 0.0
    %1103 = vmatpush1.msra.mxu0 0.0
    %1104 = vmatprep.subr.mxu0 0.0
    %1105 = vmatpush1.msra.mxu0 0.0
    %1106 = vmatprep.subr.mxu0 0.0
    %1107 = vmatpush1.msra.mxu0 0.0
    %1108 = vmatprep.subr.mxu0 0.0
    %1109 = vmatpush1.msra.mxu0 0.0
    %1110 = vmatprep.subr.mxu0 0.0
    %1111 = vmatpush1.msra.mxu0 0.0
    %1112 = vmatprep.subr.mxu0 0.0
    %1113 = vmatpush1.msra.mxu0 0.0
    %1114 = vmatprep.subr.mxu0 0.0
    %1115 = vmatpush1.msra.mxu0 0.0
    %1116 = vmatprep.subr.mxu0 0.0
    %1117 = vmatpush1.msra.mxu0 0.0
    %1118 = vmatprep.subr.mxu0 0.0
    %1119 = vmatpush1.msra.mxu0 0.0
    %1120 = vmatprep.subr.mxu0 0.0
    %1121 = vmatpush1.msra.mxu0 0.0
    %1122 = vmatprep.subr.mxu0 0.0
    %1123 = vmatpush1.msra.mxu0 0.0
    %1124 = vmatprep.subr.mxu0 0.0
    %1125 = vmatpush1.msra.mxu0 0.0
    %1126 = vmatprep.subr.mxu0 0.0
    %1127 = vmatpush1.msra.mxu0 0.0
    %1128 = vmatprep.subr.mxu0 0.0
    %1129 = vmatpush1.msra.mxu0 0.0
    %1130 = vmatprep.subr.mxu0 0.0
    %1131 = vmatpush1.msra.mxu0 0.0
    %1132 = vmatprep.subr.mxu0 0.0
    %1133 = vmatpush1.msra.mxu0 0.0
    %1134 = vmatprep.mubr.f32.mxu0 0.0
    %1135 = vmatmul.mubr.f32.gmra.mrb[0].mxu0 %v1065
    %v1136 = vpop.f32.mrb[0].mxu0
    %v1137 = vadd.f32 0.0, %v1136
    %v1138 = vpop.f32.mrb[0].mxu0
    %1139 = vmatprep.mubr.f32.mxu0 0.0
    %1140 = vmatmul.mubr.f32.gmra.mrb[0].mxu0 %v1068
    %v1141 = vpop.f32.mrb[0].mxu0
    %v1142 = vadd.f32 0.0, %v1141
    %v1143 = vpop.f32.mrb[0].mxu0
    %1144 = vdwg.mxu0
    %v1145 = vadd.f32 %v30, %v1137
    %v1146 = vadd.f32 %v31, %v1142
    %1147 = vst.msk [vmem:[#allocation5] sm:$0xff] %vm205, %v1145
    %1148 = vst.msk [vmem:[#allocation5 + $0x8] sm:$0xff] %vm205, %v1146
    // Predicated region
    $region18: #{tpu_custom_call.1} parent=1 // pred_check
      _
    $region19: #{tpu_custom_call.1} parent=1 // pred_check_branch
      %1150 = sbr.rel (0) target = $region21
    $region20: #{tpu_custom_call.1} parent=1 // pred_region
      %s1152 = ssub.s32 256, 256
      %1153 = vsyncadd [#allocation3], %s1152
      %s1154 = sshll.u32 [#allocation5], 4
      %s1155 = int_to_ptr.vmem [resolvable:$true] %s1154
      %1160 = dma.vmem_to_hbm [thread:$0]  %s1155, 256, %s3, [#allocation3], 128, 128, 8
    $region21: #{tpu_custom_call.1} parent=1 // pred_fallthru
      _
    // Predicated region
    $region22: #{tpu_custom_call.1} parent=1 // pred_check
      _
    $region23: #{tpu_custom_call.1} parent=1 // pred_check_branch
      %1162 = sbr.rel (0) target = $region25
    $region24: #{tpu_custom_call.1} parent=1 // pred_region
      %1163 = dma.done [#allocation3], 256
    $region25: #{tpu_custom_call.1} parent=1 // pred_fallthru
      _
    %1164 = vsyncpa [#allocation3], 1
    %1165 = vsyncpa [#allocation4], 1

</llo_original>
